<compile_context>
chip_gen: v7x
topology: tpu7x:2x2x1
jax: 0.10.0
libtpu: 0.0.40
codegen_flags: <defaults>
</compile_context>

<pallas_src>
import functools

import jax
import jax.numpy as jnp
from jax.experimental import pallas as pl
from jax.experimental.pallas import tpu as pltpu

OUT_LANES = 128  # lane-dense classifier output slab


# --------------------------------------------------------------------------- #
# Kernel
# --------------------------------------------------------------------------- #
def scoring_kernel(seq_ref, w_attn_h_ref, w_attn_x_ref, b_attn_ref, v_ref,
                   w_gates_ref, b_gates_ref, wc_ref, bc_ref, out_ref):
    """One grid step = Bt batch elements, full (S, H) per element."""
    x = seq_ref[...]                                   # [Bt, S, H] (compute dtype)
    Bt, S, H = x.shape
    x2 = x.reshape(Bt * S, H)                          # fold batch into matmul M dim

    # ----- Attention.score -----
    # cat([hidden, enc]) @ W_attn == hidden @ W_top + enc @ W_bot
    h0 = x[:, 0, :]                                                    # [Bt, H] CLS
    e_h = jnp.dot(h0, w_attn_h_ref[...],
                  preferred_element_type=jnp.float32)                  # [Bt, H] f32
    e_hb = e_h + b_attn_ref[...]                       # fold bias once (not [Bt,S,H])
    e_x = jnp.dot(x2, w_attn_x_ref[...],
                  preferred_element_type=jnp.float32)                  # [Bt*S, H]
    energy = jnp.tanh(e_x.reshape(Bt, S, H) + e_hb[:, None, :])        # [Bt,S,H] f32

    # scores = energy . v : f32 VPU multiply + lane (XLU) reduce — no MXU N=1 matmul,
    # no bf16 cast of energy.  Softmax over the sequence axis, all f32.
    scores = jnp.sum(energy * v_ref[...], axis=-1, keepdims=True)      # [Bt, S, 1]
    m = jnp.max(scores, axis=1, keepdims=True)
    p = jnp.exp(scores - m)
    w = p / jnp.sum(p, axis=1, keepdims=True)                          # [Bt, S, 1] f32

    # ----- context = attn_weights.bmm(sequence_output) -----
    # f32 VPU weighted sum over S (replaces Bt tiny one-row MXU matmuls).
    context = jnp.sum(w * x.astype(jnp.float32), axis=1)               # [Bt, H] f32

    # ----- bidirectional LSTM over a length-1 sequence (h0 = c0 = 0) -----
    # Single fused gate matmul; columns pre-packed as [i_f|i_b | g_f|g_b | o_f|o_b]
    # so feat == concat(h_fwd, h_bwd) with no lane-axis concatenate.
    gates = jnp.dot(context.astype(w_gates_ref.dtype), w_gates_ref[...],
                    preferred_element_type=jnp.float32) + b_gates_ref[...]  # [Bt,3H]
    i = jax.nn.sigmoid(gates[:, 0 * H:1 * H])
    g = jnp.tanh(gates[:, 1 * H:2 * H])
    o = jax.nn.sigmoid(gates[:, 2 * H:3 * H])
    feat = o * jnp.tanh(i * g)                                         # [Bt, H] f32

    # ----- classifier (dropout = identity in eval); lane-dense 128-wide store -----
    out_ref[...] = (jnp.dot(feat.astype(wc_ref.dtype), wc_ref[...],
                            preferred_element_type=jnp.float32)
                    + bc_ref[...]).astype(out_ref.dtype)               # [Bt, 128]


# --------------------------------------------------------------------------- #
# Parameter packing (pure JAX, outside the kernel)
# --------------------------------------------------------------------------- #
def _pack_params(params, H, compute_dtype):
    h2 = H // 2
    cd = compute_dtype

    def gate_pack(wf, wb):
        # PyTorch LSTM gate order is (i, f, g, o); drop f (c0 == 0), interleave
        # forward/backward per gate: [i_f | i_b | g_f | g_b | o_f | o_b].
        return jnp.concatenate(
            [wf[..., 0 * h2:1 * h2], wb[..., 0 * h2:1 * h2],   # i
             wf[..., 2 * h2:3 * h2], wb[..., 2 * h2:3 * h2],   # g
             wf[..., 3 * h2:4 * h2], wb[..., 3 * h2:4 * h2]],  # o
            axis=-1)

    w_gates = gate_pack(params["wih_f"], params["wih_b"]).astype(cd)       # [H, 3H]
    b_gates = gate_pack(params["b_f"], params["b_b"]).astype(jnp.float32)  # [1, 3H]

    wc_pad = jnp.zeros((H, OUT_LANES), cd).at[:, :2].set(params["wc"].astype(cd))
    bc_pad = jnp.zeros((1, OUT_LANES), jnp.float32).at[:, :2].set(params["bc"])

    return dict(
        w_attn_h=params["attn_w"][0:H, :].astype(cd),        # [H, H] (hidden half)
        w_attn_x=params["attn_w"][H:2 * H, :].astype(cd),    # [H, H] (encoder half)
        b_attn=params["attn_b"].astype(jnp.float32),         # [1, H]  f32
        v=params["v"].astype(jnp.float32),                   # [1, H]  f32 (VPU use)
        w_gates=w_gates, b_gates=b_gates,
        wc=wc_pad, bc=bc_pad,
    )


# --------------------------------------------------------------------------- #
# Generation-aware tiling / VMEM heuristics
# --------------------------------------------------------------------------- #
def _device_kind():
    try:
        return jax.devices()[0].device_kind.lower()
    except Exception:
        return ""


def _auto_vmem_limit_bytes():
    kind = _device_kind()
    if "v7" in kind:
        return 48 * 1024 * 1024   # 64 MiB physical per TC on v7x -> leave headroom
    if "v6" in kind or "v5e" in kind or "v5 lite" in kind:
        return 96 * 1024 * 1024   # 128 MiB physical on v5e / v6e
    return None                    # unknown chip: keep compiler default (safe)


def _auto_batch_tile(B, S, H, compute_dtype, vmem_limit_bytes):
    kind = _device_kind()
    if "v7" in kind:
        target = 64    # smaller VMEM (64 MiB) + keep grid >= 2 for the 2 TensorCores
    else:
        target = 128   # v5e/v6e: fills the 128/256-row MXU
    # VMEM clamp: double-buffered streamed block + ~3 f32 [Bt,S,H]-sized
    # intermediates (energy / softmax / weighted sum) must fit with headroom.
    itemsize = jnp.dtype(compute_dtype).itemsize
    budget = vmem_limit_bytes if vmem_limit_bytes is not None else 32 * 1024 * 1024
    per_row = S * H * (2 * itemsize + 3 * 4)
    cap = max(8, int(budget // (2 * max(per_row, 1))))
    # keep >= 2 grid steps when the batch allows it (megacore / pipeline overlap)
    bt = min(target, cap, max(8, pl.next_power_of_2(pl.cdiv(max(B, 1), 2))))
    return max(8, (bt // 8) * 8)   # multiple of 8: sublane alignment of output block


# --------------------------------------------------------------------------- #
# pallas_call wrapper
# --------------------------------------------------------------------------- #
@functools.partial(jax.jit,
                   static_argnames=("batch_tile", "compute_dtype",
                                    "vmem_limit_bytes", "single_buffer_weights"))
def _scoring_forward(sequence_output, params, *, batch_tile, compute_dtype,
                     vmem_limit_bytes, single_buffer_weights):
    B, S, H = sequence_output.shape
    Bt = batch_tile
    B_pad = pl.cdiv(B, Bt) * Bt

    seq = sequence_output.astype(compute_dtype)
    if B_pad != B:
        # zero-padded batch rows flow through the kernel harmlessly (no NaN/Inf)
        # and are sliced off below.
        seq = jnp.pad(seq, ((0, B_pad - B), (0, 0), (0, 0)))

    pk = _pack_params(params, H, compute_dtype)

    def const_spec(shape):
        # Weights never change across grid steps (constant index_map -> fetched
        # once and VMEM-resident); single-buffer them to halve their footprint.
        index_map = lambda b: (0,) * len(shape)
        if single_buffer_weights:
            return pl.BlockSpec(shape, index_map,
                                pipeline_mode=pl.Buffered(buffer_count=1))
        return pl.BlockSpec(shape, index_map)

    cp_kwargs = dict(dimension_semantics=("parallel",))
    if vmem_limit_bytes is not None:
        cp_kwargs["vmem_limit_bytes"] = int(vmem_limit_bytes)

    out = pl.pallas_call(
        scoring_kernel,
        out_shape=jax.ShapeDtypeStruct((B_pad, OUT_LANES), jnp.float32),
        grid_spec=pltpu.PrefetchScalarGridSpec(
            num_scalar_prefetch=0,
            grid=(B_pad // Bt,),
            in_specs=[
                pl.BlockSpec((Bt, S, H), lambda b: (b, 0, 0)),   # sequence_output
                const_spec((H, H)),             # attn W, hidden half
                const_spec((H, H)),             # attn W, encoder half
                const_spec((1, H)),             # attn bias
                const_spec((1, H)),             # v (f32, VPU reduce)
                const_spec((H, 3 * H)),         # fused LSTM gate W
                const_spec((1, 3 * H)),         # fused LSTM gate bias
                const_spec((H, OUT_LANES)),     # classifier W (lane-padded)
                const_spec((1, OUT_LANES)),     # classifier b (lane-padded)
            ],
            out_specs=pl.BlockSpec((Bt, OUT_LANES), lambda b: (b, 0)),
        ),
        compiler_params=pltpu.CompilerParams(**cp_kwargs),
    )(seq, pk["w_attn_h"], pk["w_attn_x"], pk["b_attn"], pk["v"],
      pk["w_gates"], pk["b_gates"], pk["wc"], pk["bc"])

    return out[:B, :2]


_SINGLE_BUFFER_OK = None   # memoized support check for pl.Buffered(1)


def scoring_forward_pallas(sequence_output, params, *, batch_tile=None,
                           compute_dtype=jnp.bfloat16, vmem_limit_bytes=None):
    """Non-jit wrapper: per-generation tiling/VMEM defaults + Buffered(1) fallback."""
    global _SINGLE_BUFFER_OK
    B, S, H = sequence_output.shape

    if vmem_limit_bytes is None:
        vmem_limit_bytes = _auto_vmem_limit_bytes()
    if batch_tile is None:
        batch_tile = _auto_batch_tile(B, S, H, compute_dtype, vmem_limit_bytes)
    batch_tile = int(max(8, ((int(batch_tile) + 7) // 8) * 8))

    kwargs = dict(batch_tile=batch_tile, compute_dtype=compute_dtype,
                  vmem_limit_bytes=vmem_limit_bytes)

    if _SINGLE_BUFFER_OK is None or _SINGLE_BUFFER_OK:
        try:
            out = _scoring_forward(sequence_output, params,
                                   single_buffer_weights=True, **kwargs)
            _SINGLE_BUFFER_OK = True
            return out
        except Exception:
            if _SINGLE_BUFFER_OK:
                raise              # single-buffering known good -> genuine error
            _SINGLE_BUFFER_OK = False
    # Fallback: default (double-buffered) weight blocks — correctness identical.
    return _scoring_forward(sequence_output, params,
                            single_buffer_weights=False, **kwargs)


# --------------------------------------------------------------------------- #
# Pure-JAX reference (mirrors the PyTorch forward, f32)
# --------------------------------------------------------------------------- #
def scoring_forward_ref(sequence_output, params):
    B, S, H = sequence_output.shape
    h2 = H // 2
    hidden = sequence_output[:, 0:1, :]                            # [B, 1, H]
    hidden_rep = jnp.broadcast_to(hidden, (B, S, H))
    cat = jnp.concatenate([hidden_rep, sequence_output], axis=2)   # [B, S, 2H]
    energy = jnp.tanh(cat @ params["attn_w"] + params["attn_b"])   # [B, S, H]
    scores = jnp.einsum("bsh,h->bs", energy, params["v"][0])       # [B, S]
    attn = jax.nn.softmax(scores, axis=1)[:, None, :]              # [B, 1, S]
    context = attn @ sequence_output                               # [B, 1, H]
    ctx = context[:, 0, :]                                         # [B, H]

    def cell(ctx, wih, b):
        gates = ctx @ wih + b
        i = jax.nn.sigmoid(gates[:, 0 * h2:1 * h2])
        g = jnp.tanh(gates[:, 2 * h2:3 * h2])
        o = jax.nn.sigmoid(gates[:, 3 * h2:4 * h2])
        return o * jnp.tanh(i * g)

    h_f = cell(ctx, params["wih_f"], params["b_f"][0])
    h_b = cell(ctx, params["wih_b"], params["b_b"][0])
    feat = jnp.concatenate([h_f, h_b], axis=1)
    return feat @ params["wc"] + params["bc"]


def init_params(key, H):
    h2 = H // 2
    ks = jax.random.split(key, 12)
    u = lambda k, shape, bound: jax.random.uniform(
        k, shape, jnp.float32, minval=-bound, maxval=bound)
    k_attn = 1.0 / jnp.sqrt(2.0 * H)
    k_lstm = 1.0 / jnp.sqrt(float(h2))
    k_cls = 1.0 / jnp.sqrt(float(H))
    return {
        # nn.Linear(2H, H): stored transposed so x @ W
        "attn_w": u(ks[0], (2 * H, H), k_attn),
        "attn_b": u(ks[1], (1, H), k_attn),
        # Attention.v ~ U(-1/sqrt(H), 1/sqrt(H))
        "v": u(ks[2], (1, H), 1.0 / jnp.sqrt(float(H))),
        # LSTM W_ih^T [H, 4*h2] in (i, f, g, o) order; biases = b_ih + b_hh combined
        "wih_f": u(ks[3], (H, 4 * h2), k_lstm),
        "b_f": u(ks[4], (1, 4 * h2), k_lstm) + u(ks[5], (1, 4 * h2), k_lstm),
        "wih_b": u(ks[6], (H, 4 * h2), k_lstm),
        "b_b": u(ks[7], (1, 4 * h2), k_lstm) + u(ks[8], (1, 4 * h2), k_lstm),
        # classifier Linear(H, 2)
        "wc": u(ks[9], (H, 2), k_cls),
        "bc": u(ks[10], (1, 2), k_cls),
    }


if __name__ == "__main__":
    S, H, VOCAB = 8, 32, 50

    root = jax.random.PRNGKey(0)
    k_emb, k_params, k_ids = jax.random.split(root, 3)

    # TODO(synk): stand-in for BertModel.last_hidden_state (pretrained backbone not
    # reproducible in-script): deterministic embedding lookup.
    embedding_table = jax.random.normal(k_emb, (VOCAB, H), jnp.float32)
    params = init_params(k_params, H)

    # (batch, compute dtype, batch_tile, tolerance). f32 pins exact semantics;
    # bf16 is the optimized path (bf16 stream + matmul weights, f32 accumulation,
    # f32 softmax / elementwise). batch_tile=None exercises the auto per-gen tile.
    checks = [
        (2, jnp.float32, 8, 1e-4),
        (2, jnp.bfloat16, None, 5e-2),
        (20, jnp.bfloat16, 8, 5e-2),     # grid > 1 and batch padding
        (20, jnp.float32, None, 1e-4),   # auto tile -> >= 2 grid steps
    ]
    for B, cd, bt, tol in checks:
        k = jax.random.fold_in(k_ids, B)
        input_ids = jax.random.randint(k, (B, S), 0, VOCAB)
        attention_mask = jnp.ones((B, S), dtype=jnp.int32)   # BERT-only input (unused)
        sequence_output = embedding_table[input_ids]          # [B, S, H]

        logits = scoring_forward_pallas(sequence_output, params,
                                        batch_tile=bt, compute_dtype=cd)
        logits = jax.block_until_ready(logits)

        ref = scoring_forward_ref(sequence_output, params)
        assert logits.shape == (B, 2), logits.shape
        err = float(jnp.max(jnp.abs(logits - ref)))
        assert jnp.allclose(logits, ref, atol=tol, rtol=tol), (B, str(cd), err)

    print("KERNEL_OK")
</pallas_src>

<mosaic_0001>
module attributes {stable_mosaic.version = 11 : i64} {
  func.func @scoring_kernel(%arg0: i32, %arg1: memref<8x8x32xf32, #tpu.memory_space<vmem>>, %arg2: memref<32x32xf32, #tpu.memory_space<vmem>>, %arg3: memref<32x32xf32, #tpu.memory_space<vmem>>, %arg4: memref<1x32xf32, #tpu.memory_space<vmem>>, %arg5: memref<1x32xf32, #tpu.memory_space<vmem>>, %arg6: memref<32x96xf32, #tpu.memory_space<vmem>>, %arg7: memref<1x96xf32, #tpu.memory_space<vmem>>, %arg8: memref<32x128xf32, #tpu.memory_space<vmem>>, %arg9: memref<1x128xf32, #tpu.memory_space<vmem>>, %arg10: memref<8x128xf32, #tpu.memory_space<vmem>>) attributes {dimension_semantics = [#tpu.dimension_semantics<parallel>], iteration_bounds = array<i64: 1>, scalar_prefetch = 0 : i64, scratch_operands = 0 : i64, tpu.core_type = #tpu.core_type<tc>, window_params = [{transform_indices = @transform_0, window_bounds = array<i64: 8, 8, 32>}, {pipeline_mode = #tpu.pipeline_mode<synchronous>, transform_indices = @transform_1, window_bounds = array<i64: 32, 32>}, {pipeline_mode = #tpu.pipeline_mode<synchronous>, transform_indices = @transform_2, window_bounds = array<i64: 32, 32>}, {pipeline_mode = #tpu.pipeline_mode<synchronous>, transform_indices = @transform_3, window_bounds = array<i64: 1, 32>}, {pipeline_mode = #tpu.pipeline_mode<synchronous>, transform_indices = @transform_4, window_bounds = array<i64: 1, 32>}, {pipeline_mode = #tpu.pipeline_mode<synchronous>, transform_indices = @transform_5, window_bounds = array<i64: 32, 96>}, {pipeline_mode = #tpu.pipeline_mode<synchronous>, transform_indices = @transform_6, window_bounds = array<i64: 1, 96>}, {pipeline_mode = #tpu.pipeline_mode<synchronous>, transform_indices = @transform_7, window_bounds = array<i64: 32, 128>}, {pipeline_mode = #tpu.pipeline_mode<synchronous>, transform_indices = @transform_8, window_bounds = array<i64: 1, 128>}, {transform_indices = @transform_9, window_bounds = array<i64: 8, 128>}]} {
    %c0 = arith.constant 0 : index
    %c0_0 = arith.constant 0 : index
    %c0_1 = arith.constant 0 : index
    %0 = vector.load %arg1[%c0, %c0_0, %c0_1] : memref<8x8x32xf32, #tpu.memory_space<vmem>>, vector<8x8x32xf32>
    %1 = vector.shape_cast %0 : vector<8x8x32xf32> to vector<64x32xf32>
    %2 = vector.extract_strided_slice %0 {offsets = [0, 0, 0], sizes = [8, 1, 32], strides = [1, 1, 1]} : vector<8x8x32xf32> to vector<8x1x32xf32>
    %3 = vector.shape_cast %2 : vector<8x1x32xf32> to vector<8x32xf32>
    %c0_2 = arith.constant 0 : index
    %c0_3 = arith.constant 0 : index
    %4 = vector.load %arg2[%c0_2, %c0_3] : memref<32x32xf32, #tpu.memory_space<vmem>>, vector<32x32xf32>
    %cst = arith.constant dense<0.000000e+00> : vector<8x32xf32>
    %5 = tpu.matmul %3, %4, %cst {dimension_numbers = #tpu.dot_dimension_numbers<[1], [0], [0], [1], [0, 0, 1, 1], [], []>} : vector<8x32xf32>, vector<32x32xf32>, vector<8x32xf32> -> vector<8x32xf32>
    %c0_4 = arith.constant 0 : index
    %c0_5 = arith.constant 0 : index
    %6 = vector.load %arg4[%c0_4, %c0_5] : memref<1x32xf32, #tpu.memory_space<vmem>>, vector<1x32xf32>
    %7 = vector.broadcast %6 : vector<1x32xf32> to vector<8x32xf32>
    %8 = arith.addf %5, %7 : vector<8x32xf32>
    %c0_6 = arith.constant 0 : index
    %c0_7 = arith.constant 0 : index
    %9 = vector.load %arg3[%c0_6, %c0_7] : memref<32x32xf32, #tpu.memory_space<vmem>>, vector<32x32xf32>
    %cst_8 = arith.constant dense<0.000000e+00> : vector<64x32xf32>
    %10 = tpu.matmul %1, %9, %cst_8 {dimension_numbers = #tpu.dot_dimension_numbers<[1], [0], [0], [1], [0, 0, 1, 1], [], []>} : vector<64x32xf32>, vector<32x32xf32>, vector<64x32xf32> -> vector<64x32xf32>
    %11 = vector.shape_cast %10 : vector<64x32xf32> to vector<8x8x32xf32>
    %12 = vector.shape_cast %8 : vector<8x32xf32> to vector<8x1x32xf32>
    %13 = vector.broadcast %12 : vector<8x1x32xf32> to vector<8x8x32xf32>
    %14 = arith.addf %11, %13 : vector<8x8x32xf32>
    %15 = math.tanh %14 : vector<8x8x32xf32>
    %c0_9 = arith.constant 0 : index
    %c0_10 = arith.constant 0 : index
    %16 = vector.load %arg5[%c0_9, %c0_10] : memref<1x32xf32, #tpu.memory_space<vmem>>, vector<1x32xf32>
    %17 = vector.shape_cast %16 : vector<1x32xf32> to vector<1x1x32xf32>
    %18 = vector.broadcast %17 : vector<1x1x32xf32> to vector<8x8x32xf32>
    %19 = arith.mulf %15, %18 : vector<8x8x32xf32>
    %cst_11 = arith.constant dense<0.000000e+00> : vector<8x8xf32>
    %20 = vector.multi_reduction <add>, %19, %cst_11 [2] : vector<8x8x32xf32> to vector<8x8xf32>
    %21 = vector.shape_cast %20 : vector<8x8xf32> to vector<8x8x1xf32>
    %cst_12 = arith.constant dense<0xFF800000> : vector<8x1xf32>
    %22 = vector.multi_reduction <maximumf>, %21, %cst_12 [1] : vector<8x8x1xf32> to vector<8x1xf32>
    %23 = vector.shape_cast %22 : vector<8x1xf32> to vector<8x1x1xf32>
    %24 = vector.broadcast %23 : vector<8x1x1xf32> to vector<8x8x1xf32>
    %25 = arith.subf %21, %24 : vector<8x8x1xf32>
    %26 = math.exp %25 : vector<8x8x1xf32>
    %cst_13 = arith.constant dense<0.000000e+00> : vector<8x1xf32>
    %27 = vector.multi_reduction <add>, %26, %cst_13 [1] : vector<8x8x1xf32> to vector<8x1xf32>
    %28 = vector.shape_cast %27 : vector<8x1xf32> to vector<8x1x1xf32>
    %29 = vector.broadcast %28 : vector<8x1x1xf32> to vector<8x8x1xf32>
    %30 = arith.divf %26, %29 : vector<8x8x1xf32>
    %31 = vector.broadcast %30 : vector<8x8x1xf32> to vector<8x8x32xf32>
    %32 = arith.mulf %31, %0 : vector<8x8x32xf32>
    %cst_14 = arith.constant dense<0.000000e+00> : vector<8x32xf32>
    %33 = vector.multi_reduction <add>, %32, %cst_14 [1] : vector<8x8x32xf32> to vector<8x32xf32>
    %c0_15 = arith.constant 0 : index
    %c0_16 = arith.constant 0 : index
    %34 = vector.load %arg6[%c0_15, %c0_16] : memref<32x96xf32, #tpu.memory_space<vmem>>, vector<32x96xf32>
    %cst_17 = arith.constant dense<0.000000e+00> : vector<8x96xf32>
    %35 = tpu.matmul %33, %34, %cst_17 {dimension_numbers = #tpu.dot_dimension_numbers<[1], [0], [0], [1], [0, 0, 1, 1], [], []>} : vector<8x32xf32>, vector<32x96xf32>, vector<8x96xf32> -> vector<8x96xf32>
    %c0_18 = arith.constant 0 : index
    %c0_19 = arith.constant 0 : index
    %36 = vector.load %arg7[%c0_18, %c0_19] : memref<1x96xf32, #tpu.memory_space<vmem>>, vector<1x96xf32>
    %37 = vector.broadcast %36 : vector<1x96xf32> to vector<8x96xf32>
    %38 = arith.addf %35, %37 : vector<8x96xf32>
    %39 = vector.extract_strided_slice %38 {offsets = [0, 0], sizes = [8, 32], strides = [1, 1]} : vector<8x96xf32> to vector<8x32xf32>
    %40 = arith.negf %39 : vector<8x32xf32>
    %41 = math.exp %40 : vector<8x32xf32>
    %cst_20 = arith.constant 1.000000e+00 : f32
    %42 = vector.broadcast %cst_20 : f32 to vector<8x32xf32>
    %43 = arith.addf %42, %41 : vector<8x32xf32>
    %44 = arith.divf %42, %43 : vector<8x32xf32>
    %45 = vector.extract_strided_slice %38 {offsets = [0, 32], sizes = [8, 32], strides = [1, 1]} : vector<8x96xf32> to vector<8x32xf32>
    %46 = math.tanh %45 : vector<8x32xf32>
    %47 = vector.extract_strided_slice %38 {offsets = [0, 64], sizes = [8, 32], strides = [1, 1]} : vector<8x96xf32> to vector<8x32xf32>
    %48 = arith.negf %47 : vector<8x32xf32>
    %49 = math.exp %48 : vector<8x32xf32>
    %cst_21 = arith.constant 1.000000e+00 : f32
    %50 = vector.broadcast %cst_21 : f32 to vector<8x32xf32>
    %51 = arith.addf %50, %49 : vector<8x32xf32>
    %52 = arith.divf %50, %51 : vector<8x32xf32>
    %53 = arith.mulf %44, %46 : vector<8x32xf32>
    %54 = math.tanh %53 : vector<8x32xf32>
    %55 = arith.mulf %52, %54 : vector<8x32xf32>
    %c0_22 = arith.constant 0 : index
    %c0_23 = arith.constant 0 : index
    %56 = vector.load %arg8[%c0_22, %c0_23] : memref<32x128xf32, #tpu.memory_space<vmem>>, vector<32x128xf32>
    %cst_24 = arith.constant dense<0.000000e+00> : vector<8x128xf32>
    %57 = tpu.matmul %55, %56, %cst_24 {dimension_numbers = #tpu.dot_dimension_numbers<[1], [0], [0], [1], [0, 0, 1, 1], [], []>} : vector<8x32xf32>, vector<32x128xf32>, vector<8x128xf32> -> vector<8x128xf32>
    %c0_25 = arith.constant 0 : index
    %c0_26 = arith.constant 0 : index
    %58 = vector.load %arg9[%c0_25, %c0_26] : memref<1x128xf32, #tpu.memory_space<vmem>>, vector<1x128xf32>
    %59 = vector.broadcast %58 : vector<1x128xf32> to vector<8x128xf32>
    %60 = arith.addf %57, %59 : vector<8x128xf32>
    %c0_27 = arith.constant 0 : index
    %c0_28 = arith.constant 0 : index
    %61 = vector.load %arg10[%c0_27, %c0_28] : memref<8x128xf32, #tpu.memory_space<vmem>>, vector<8x128xf32>
    tpu.vector_store %arg10[%c0_27, %c0_28], %60 {strides = array<i32>} : memref<8x128xf32, #tpu.memory_space<vmem>>, vector<8x128xf32>,
    return
  }
  func.func @transform_0(%arg0: i32) -> (i32, i32, i32) {
    %c0_i32 = arith.constant 0 : i32
    %c0_i32_0 = arith.constant 0 : i32
    %c0_i32_1 = arith.constant 0 : i32
    return %arg0, %c0_i32, %c0_i32_0 : i32, i32, i32
  }
  func.func @transform_1(%arg0: i32) -> (i32, i32) {
    %c0_i32 = arith.constant 0 : i32
    %c0_i32_0 = arith.constant 0 : i32
    %c0_i32_1 = arith.constant 0 : i32
    return %c0_i32, %c0_i32_0 : i32, i32
  }
  func.func @transform_2(%arg0: i32) -> (i32, i32) {
    %c0_i32 = arith.constant 0 : i32
    %c0_i32_0 = arith.constant 0 : i32
    %c0_i32_1 = arith.constant 0 : i32
    return %c0_i32, %c0_i32_0 : i32, i32
  }
  func.func @transform_3(%arg0: i32) -> (i32, i32) {
    %c0_i32 = arith.constant 0 : i32
    %c0_i32_0 = arith.constant 0 : i32
    %c0_i32_1 = arith.constant 0 : i32
    return %c0_i32, %c0_i32_0 : i32, i32
  }
  func.func @transform_4(%arg0: i32) -> (i32, i32) {
    %c0_i32 = arith.constant 0 : i32
    %c0_i32_0 = arith.constant 0 : i32
    %c0_i32_1 = arith.constant 0 : i32
    return %c0_i32, %c0_i32_0 : i32, i32
  }
  func.func @transform_5(%arg0: i32) -> (i32, i32) {
    %c0_i32 = arith.constant 0 : i32
    %c0_i32_0 = arith.constant 0 : i32
    %c0_i32_1 = arith.constant 0 : i32
    return %c0_i32, %c0_i32_0 : i32, i32
  }
  func.func @transform_6(%arg0: i32) -> (i32, i32) {
    %c0_i32 = arith.constant 0 : i32
    %c0_i32_0 = arith.constant 0 : i32
    %c0_i32_1 = arith.constant 0 : i32
    return %c0_i32, %c0_i32_0 : i32, i32
  }
  func.func @transform_7(%arg0: i32) -> (i32, i32) {
    %c0_i32 = arith.constant 0 : i32
    %c0_i32_0 = arith.constant 0 : i32
    %c0_i32_1 = arith.constant 0 : i32
    return %c0_i32, %c0_i32_0 : i32, i32
  }
  func.func @transform_8(%arg0: i32) -> (i32, i32) {
    %c0_i32 = arith.constant 0 : i32
    %c0_i32_0 = arith.constant 0 : i32
    %c0_i32_1 = arith.constant 0 : i32
    return %c0_i32, %c0_i32_0 : i32, i32
  }
  func.func @transform_9(%arg0: i32) -> (i32, i32) {
    %c0_i32 = arith.constant 0 : i32
    %c0_i32_0 = arith.constant 0 : i32
    return %arg0, %c0_i32 : i32, i32
  }
}

module attributes {stable_mosaic.version = 11 : i64} {
  func.func @scoring_kernel(%arg0: i32, %arg1: memref<8x8x32xf32, #tpu.memory_space<vmem>>, %arg2: memref<32x32xf32, #tpu.memory_space<vmem>>, %arg3: memref<32x32xf32, #tpu.memory_space<vmem>>, %arg4: memref<1x32xf32, #tpu.memory_space<vmem>>, %arg5: memref<1x32xf32, #tpu.memory_space<vmem>>, %arg6: memref<32x96xf32, #tpu.memory_space<vmem>>, %arg7: memref<1x96xf32, #tpu.memory_space<vmem>>, %arg8: memref<32x128xf32, #tpu.memory_space<vmem>>, %arg9: memref<1x128xf32, #tpu.memory_space<vmem>>, %arg10: memref<8x128xf32, #tpu.memory_space<vmem>>) attributes {dimension_semantics = [#tpu.dimension_semantics<parallel>], iteration_bounds = array<i64: 1>, scalar_prefetch = 0 : i64, scratch_operands = 0 : i64, tpu.core_type = #tpu.core_type<tc>, window_params = [{transform_indices = @transform_0, window_bounds = array<i64: 8, 8, 32>}, {pipeline_mode = #tpu.pipeline_mode<synchronous>, transform_indices = @transform_1, window_bounds = array<i64: 32, 32>}, {pipeline_mode = #tpu.pipeline_mode<synchronous>, transform_indices = @transform_2, window_bounds = array<i64: 32, 32>}, {pipeline_mode = #tpu.pipeline_mode<synchronous>, transform_indices = @transform_3, window_bounds = array<i64: 1, 32>}, {pipeline_mode = #tpu.pipeline_mode<synchronous>, transform_indices = @transform_4, window_bounds = array<i64: 1, 32>}, {pipeline_mode = #tpu.pipeline_mode<synchronous>, transform_indices = @transform_5, window_bounds = array<i64: 32, 96>}, {pipeline_mode = #tpu.pipeline_mode<synchronous>, transform_indices = @transform_6, window_bounds = array<i64: 1, 96>}, {pipeline_mode = #tpu.pipeline_mode<synchronous>, transform_indices = @transform_7, window_bounds = array<i64: 32, 128>}, {pipeline_mode = #tpu.pipeline_mode<synchronous>, transform_indices = @transform_8, window_bounds = array<i64: 1, 128>}, {transform_indices = @transform_9, window_bounds = array<i64: 8, 128>}]} {
    %c0 = arith.constant 0 : index
    %c0_0 = arith.constant 0 : index
    %c0_1 = arith.constant 0 : index
    %0 = vector.load %arg1[%c0, %c0_0, %c0_1] : memref<8x8x32xf32, #tpu.memory_space<vmem>>, vector<8x8x32xf32>
    %1 = vector.shape_cast %0 : vector<8x8x32xf32> to vector<64x32xf32>
    %2 = vector.extract_strided_slice %0 {offsets = [0, 0, 0], sizes = [8, 1, 32], strides = [1, 1, 1]} : vector<8x8x32xf32> to vector<8x1x32xf32>
    %3 = vector.shape_cast %2 : vector<8x1x32xf32> to vector<8x32xf32>
    %c0_2 = arith.constant 0 : index
    %c0_3 = arith.constant 0 : index
    %4 = vector.load %arg2[%c0_2, %c0_3] : memref<32x32xf32, #tpu.memory_space<vmem>>, vector<32x32xf32>
    %cst = arith.constant dense<0.000000e+00> : vector<8x32xf32>
    %5 = tpu.matmul %3, %4, %cst {dimension_numbers = #tpu.dot_dimension_numbers<[1], [0], [0], [1], [0, 0, 1, 1], [], []>} : vector<8x32xf32>, vector<32x32xf32>, vector<8x32xf32> -> vector<8x32xf32>
    %c0_4 = arith.constant 0 : index
    %c0_5 = arith.constant 0 : index
    %6 = vector.load %arg4[%c0_4, %c0_5] : memref<1x32xf32, #tpu.memory_space<vmem>>, vector<1x32xf32>
    %7 = vector.broadcast %6 : vector<1x32xf32> to vector<8x32xf32>
    %8 = arith.addf %5, %7 : vector<8x32xf32>
    %c0_6 = arith.constant 0 : index
    %c0_7 = arith.constant 0 : index
    %9 = vector.load %arg3[%c0_6, %c0_7] : memref<32x32xf32, #tpu.memory_space<vmem>>, vector<32x32xf32>
    %cst_8 = arith.constant dense<0.000000e+00> : vector<64x32xf32>
    %10 = tpu.matmul %1, %9, %cst_8 {dimension_numbers = #tpu.dot_dimension_numbers<[1], [0], [0], [1], [0, 0, 1, 1], [], []>} : vector<64x32xf32>, vector<32x32xf32>, vector<64x32xf32> -> vector<64x32xf32>
    %11 = vector.shape_cast %10 : vector<64x32xf32> to vector<8x8x32xf32>
    %12 = vector.shape_cast %8 : vector<8x32xf32> to vector<8x1x32xf32>
    %13 = vector.broadcast %12 : vector<8x1x32xf32> to vector<8x8x32xf32>
    %14 = arith.addf %11, %13 : vector<8x8x32xf32>
    %15 = math.tanh %14 : vector<8x8x32xf32>
    %c0_9 = arith.constant 0 : index
    %c0_10 = arith.constant 0 : index
    %16 = vector.load %arg5[%c0_9, %c0_10] : memref<1x32xf32, #tpu.memory_space<vmem>>, vector<1x32xf32>
    %17 = vector.shape_cast %16 : vector<1x32xf32> to vector<1x1x32xf32>
    %18 = vector.broadcast %17 : vector<1x1x32xf32> to vector<8x8x32xf32>
    %19 = arith.mulf %15, %18 : vector<8x8x32xf32>
    %cst_11 = arith.constant dense<0.000000e+00> : vector<8x8xf32>
    %20 = vector.multi_reduction <add>, %19, %cst_11 [2] : vector<8x8x32xf32> to vector<8x8xf32>
    %21 = vector.shape_cast %20 : vector<8x8xf32> to vector<8x8x1xf32>
    %cst_12 = arith.constant dense<0xFF800000> : vector<8x1xf32>
    %22 = vector.multi_reduction <maximumf>, %21, %cst_12 [1] : vector<8x8x1xf32> to vector<8x1xf32>
    %23 = vector.shape_cast %22 : vector<8x1xf32> to vector<8x1x1xf32>
    %24 = vector.broadcast %23 : vector<8x1x1xf32> to vector<8x8x1xf32>
    %25 = arith.subf %21, %24 : vector<8x8x1xf32>
    %26 = math.exp %25 : vector<8x8x1xf32>
    %cst_13 = arith.constant dense<0.000000e+00> : vector<8x1xf32>
    %27 = vector.multi_reduction <add>, %26, %cst_13 [1] : vector<8x8x1xf32> to vector<8x1xf32>
    %28 = vector.shape_cast %27 : vector<8x1xf32> to vector<8x1x1xf32>
    %29 = vector.broadcast %28 : vector<8x1x1xf32> to vector<8x8x1xf32>
    %30 = arith.divf %26, %29 : vector<8x8x1xf32>
    %31 = vector.broadcast %30 : vector<8x8x1xf32> to vector<8x8x32xf32>
    %32 = arith.mulf %31, %0 : vector<8x8x32xf32>
    %cst_14 = arith.constant dense<0.000000e+00> : vector<8x32xf32>
    %33 = vector.multi_reduction <add>, %32, %cst_14 [1] : vector<8x8x32xf32> to vector<8x32xf32>
    %c0_15 = arith.constant 0 : index
    %c0_16 = arith.constant 0 : index
    %34 = vector.load %arg6[%c0_15, %c0_16] : memref<32x96xf32, #tpu.memory_space<vmem>>, vector<32x96xf32>
    %cst_17 = arith.constant dense<0.000000e+00> : vector<8x96xf32>
    %35 = tpu.matmul %33, %34, %cst_17 {dimension_numbers = #tpu.dot_dimension_numbers<[1], [0], [0], [1], [0, 0, 1, 1], [], []>} : vector<8x32xf32>, vector<32x96xf32>, vector<8x96xf32> -> vector<8x96xf32>
    %c0_18 = arith.constant 0 : index
    %c0_19 = arith.constant 0 : index
    %36 = vector.load %arg7[%c0_18, %c0_19] : memref<1x96xf32, #tpu.memory_space<vmem>>, vector<1x96xf32>
    %37 = vector.broadcast %36 : vector<1x96xf32> to vector<8x96xf32>
    %38 = arith.addf %35, %37 : vector<8x96xf32>
    %39 = vector.extract_strided_slice %38 {offsets = [0, 0], sizes = [8, 32], strides = [1, 1]} : vector<8x96xf32> to vector<8x32xf32>
    %40 = arith.negf %39 : vector<8x32xf32>
    %41 = math.exp %40 : vector<8x32xf32>
    %cst_20 = arith.constant 1.000000e+00 : f32
    %42 = vector.broadcast %cst_20 : f32 to vector<8x32xf32>
    %43 = arith.addf %42, %41 : vector<8x32xf32>
    %44 = arith.divf %42, %43 : vector<8x32xf32>
    %45 = vector.extract_strided_slice %38 {offsets = [0, 32], sizes = [8, 32], strides = [1, 1]} : vector<8x96xf32> to vector<8x32xf32>
    %46 = math.tanh %45 : vector<8x32xf32>
    %47 = vector.extract_strided_slice %38 {offsets = [0, 64], sizes = [8, 32], strides = [1, 1]} : vector<8x96xf32> to vector<8x32xf32>
    %48 = arith.negf %47 : vector<8x32xf32>
    %49 = math.exp %48 : vector<8x32xf32>
    %cst_21 = arith.constant 1.000000e+00 : f32
    %50 = vector.broadcast %cst_21 : f32 to vector<8x32xf32>
    %51 = arith.addf %50, %49 : vector<8x32xf32>
    %52 = arith.divf %50, %51 : vector<8x32xf32>
    %53 = arith.mulf %44, %46 : vector<8x32xf32>
    %54 = math.tanh %53 : vector<8x32xf32>
    %55 = arith.mulf %52, %54 : vector<8x32xf32>
    %c0_22 = arith.constant 0 : index
    %c0_23 = arith.constant 0 : index
    %56 = vector.load %arg8[%c0_22, %c0_23] : memref<32x128xf32, #tpu.memory_space<vmem>>, vector<32x128xf32>
    %cst_24 = arith.constant dense<0.000000e+00> : vector<8x128xf32>
    %57 = tpu.matmul %55, %56, %cst_24 {dimension_numbers = #tpu.dot_dimension_numbers<[1], [0], [0], [1], [0, 0, 1, 1], [], []>} : vector<8x32xf32>, vector<32x128xf32>, vector<8x128xf32> -> vector<8x128xf32>
    %c0_25 = arith.constant 0 : index
    %c0_26 = arith.constant 0 : index
    %58 = vector.load %arg9[%c0_25, %c0_26] : memref<1x128xf32, #tpu.memory_space<vmem>>, vector<1x128xf32>
    %59 = vector.broadcast %58 : vector<1x128xf32> to vector<8x128xf32>
    %60 = arith.addf %57, %59 : vector<8x128xf32>
    %c0_27 = arith.constant 0 : index
    %c0_28 = arith.constant 0 : index
    %61 = vector.load %arg10[%c0_27, %c0_28] : memref<8x128xf32, #tpu.memory_space<vmem>>, vector<8x128xf32>
    tpu.vector_store %arg10[%c0_27, %c0_28], %60 {strides = array<i32>} : memref<8x128xf32, #tpu.memory_space<vmem>>, vector<8x128xf32>,
    return
  }
  func.func @transform_0(%arg0: i32) -> (i32, i32, i32) {
    %c0_i32 = arith.constant 0 : i32
    %c0_i32_0 = arith.constant 0 : i32
    %c0_i32_1 = arith.constant 0 : i32
    return %arg0, %c0_i32, %c0_i32_0 : i32, i32, i32
  }
  func.func @transform_1(%arg0: i32) -> (i32, i32) {
    %c0_i32 = arith.constant 0 : i32
    %c0_i32_0 = arith.constant 0 : i32
    %c0_i32_1 = arith.constant 0 : i32
    return %c0_i32, %c0_i32_0 : i32, i32
  }
  func.func @transform_2(%arg0: i32) -> (i32, i32) {
    %c0_i32 = arith.constant 0 : i32
    %c0_i32_0 = arith.constant 0 : i32
    %c0_i32_1 = arith.constant 0 : i32
    return %c0_i32, %c0_i32_0 : i32, i32
  }
  func.func @transform_3(%arg0: i32) -> (i32, i32) {
    %c0_i32 = arith.constant 0 : i32
    %c0_i32_0 = arith.constant 0 : i32
    %c0_i32_1 = arith.constant 0 : i32
    return %c0_i32, %c0_i32_0 : i32, i32
  }
  func.func @transform_4(%arg0: i32) -> (i32, i32) {
    %c0_i32 = arith.constant 0 : i32
    %c0_i32_0 = arith.constant 0 : i32
    %c0_i32_1 = arith.constant 0 : i32
    return %c0_i32, %c0_i32_0 : i32, i32
  }
  func.func @transform_5(%arg0: i32) -> (i32, i32) {
    %c0_i32 = arith.constant 0 : i32
    %c0_i32_0 = arith.constant 0 : i32
    %c0_i32_1 = arith.constant 0 : i32
    return %c0_i32, %c0_i32_0 : i32, i32
  }
  func.func @transform_6(%arg0: i32) -> (i32, i32) {
    %c0_i32 = arith.constant 0 : i32
    %c0_i32_0 = arith.constant 0 : i32
    %c0_i32_1 = arith.constant 0 : i32
    return %c0_i32, %c0_i32_0 : i32, i32
  }
  func.func @transform_7(%arg0: i32) -> (i32, i32) {
    %c0_i32 = arith.constant 0 : i32
    %c0_i32_0 = arith.constant 0 : i32
    %c0_i32_1 = arith.constant 0 : i32
    return %c0_i32, %c0_i32_0 : i32, i32
  }
  func.func @transform_8(%arg0: i32) -> (i32, i32) {
    %c0_i32 = arith.constant 0 : i32
    %c0_i32_0 = arith.constant 0 : i32
    %c0_i32_1 = arith.constant 0 : i32
    return %c0_i32, %c0_i32_0 : i32, i32
  }
  func.func @transform_9(%arg0: i32) -> (i32, i32) {
    %c0_i32 = arith.constant 0 : i32
    %c0_i32_0 = arith.constant 0 : i32
    return %arg0, %c0_i32 : i32, i32
  }
}

</mosaic_0001>

<llo_original>
// kernel: _scoring_forward.1
$region0: #{_scoring_forward.1}
  #allocation0 [shape = 'u32[]', space=smem, size = 0x4, offset = 0x4, fixed_abs, tag = 'smem constant byte address 0x4 - core index']
  #allocation1 [shape = 'u32[144,128]{1,0:T(1,128)}', space=vmem, size = 0x12000, scoped, tag = 'internal scratch']
  %s0 = inlined_call_operand.vmem [shape: f32[8,8,32], index: 0, kind: input, shape index: {}]
  %s1 = inlined_call_operand.vmem [shape: f32[32,32], index: 1, kind: input, shape index: {}]
  %s2 = inlined_call_operand.vmem [shape: f32[32,32], index: 2, kind: input, shape index: {}]
  %s3 = inlined_call_operand.vmem [shape: f32[1,32], index: 3, kind: input, shape index: {}]
  %s4 = inlined_call_operand.vmem [shape: f32[1,32], index: 4, kind: input, shape index: {}]
  %s5 = inlined_call_operand.vmem [shape: f32[32,96], index: 5, kind: input, shape index: {}]
  %s6 = inlined_call_operand.vmem [shape: f32[1,96], index: 6, kind: input, shape index: {}]
  %s7 = inlined_call_operand.vmem [shape: f32[32,128], index: 7, kind: input, shape index: {}]
  %s8 = inlined_call_operand.vmem [shape: f32[1,128], index: 8, kind: input, shape index: {}]
  %s9 = inlined_call_operand.vmem [shape: f32[8,128], index: 9, kind: output, shape index: {}]
  %s10 = sld [smem:[#allocation0]]
  $region46: #{_scoring_forward.1} parent=0
    _
  %s12 = ssub.s32 1, %s10
  %s13 = scalar_select 0, %s12, %s10
  // Predicated region
  $region2: #{_scoring_forward.1} parent=0 // pred_check
    _
  $region3: #{_scoring_forward.1} parent=0 // pred_check_branch
    %15 = sbr.rel (0) target = $region5
  $region4: #{_scoring_forward.1} parent=0 // pred_region
    _
  $region5: #{_scoring_forward.1} parent=0 // pred_fallthru
    _
  // Predicated region
  $region6: #{_scoring_forward.1} parent=0 // pred_check
    _
  $region7: #{_scoring_forward.1} parent=0 // pred_check_branch
    %17 = sbr.rel (0) target = $region9
  $region8: #{_scoring_forward.1} parent=0 // pred_region
    _
  $region9: #{_scoring_forward.1} parent=0 // pred_fallthru
    _
  // Predicated region
  $region10: #{_scoring_forward.1} parent=0 // pred_check
    _
  $region11: #{_scoring_forward.1} parent=0 // pred_check_branch
    %19 = sbr.rel (0) target = $region13
  $region12: #{_scoring_forward.1} parent=0 // pred_region
    _
  $region13: #{_scoring_forward.1} parent=0 // pred_fallthru
    _
  // Predicated region
  $region14: #{_scoring_forward.1} parent=0 // pred_check
    _
  $region15: #{_scoring_forward.1} parent=0 // pred_check_branch
    %21 = sbr.rel (0) target = $region17
  $region16: #{_scoring_forward.1} parent=0 // pred_region
    _
  $region17: #{_scoring_forward.1} parent=0 // pred_fallthru
    _
  // Predicated region
  $region18: #{_scoring_forward.1} parent=0 // pred_check
    _
  $region19: #{_scoring_forward.1} parent=0 // pred_check_branch
    %23 = sbr.rel (0) target = $region21
  $region20: #{_scoring_forward.1} parent=0 // pred_region
    _
  $region21: #{_scoring_forward.1} parent=0 // pred_fallthru
    _
  // Predicated region
  $region22: #{_scoring_forward.1} parent=0 // pred_check
    _
  $region23: #{_scoring_forward.1} parent=0 // pred_check_branch
    %25 = sbr.rel (0) target = $region25
  $region24: #{_scoring_forward.1} parent=0 // pred_region
    _
  $region25: #{_scoring_forward.1} parent=0 // pred_fallthru
    _
  // Predicated region
  $region26: #{_scoring_forward.1} parent=0 // pred_check
    _
  $region27: #{_scoring_forward.1} parent=0 // pred_check_branch
    %27 = sbr.rel (0) target = $region29
  $region28: #{_scoring_forward.1} parent=0 // pred_region
    _
  $region29: #{_scoring_forward.1} parent=0 // pred_fallthru
    _
  // Predicated region
  $region30: #{_scoring_forward.1} parent=0 // pred_check
    _
  $region31: #{_scoring_forward.1} parent=0 // pred_check_branch
    %29 = sbr.rel (0) target = $region33
  $region32: #{_scoring_forward.1} parent=0 // pred_region
    _
  $region33: #{_scoring_forward.1} parent=0 // pred_fallthru
    _
  // Predicated region
  $region34: #{_scoring_forward.1} parent=0 // pred_check
    _
  $region35: #{_scoring_forward.1} parent=0 // pred_check_branch
    %31 = sbr.rel (0) target = $region37
  $region36: #{_scoring_forward.1} parent=0 // pred_region
    _
  $region37: #{_scoring_forward.1} parent=0 // pred_fallthru
    _
  %v32 = vld [vmem:[%s0] sm:$0xff]
  %v33 = vld [vmem:[%s0 + $0x8] sm:$0xff]
  %v34 = vld [vmem:[%s0 + $0x10] sm:$0xff]
  %v35 = vld [vmem:[%s0 + $0x18] sm:$0xff]
  %v36 = vld [vmem:[%s0 + $0x20] sm:$0xff]
  %v37 = vld [vmem:[%s0 + $0x28] sm:$0xff]
  %v38 = vld [vmem:[%s0 + $0x30] sm:$0xff]
  %v39 = vld [vmem:[%s0 + $0x38] sm:$0xff]
  %v40 = vld [vmem:[%s1] sm:$0xff]
  %v41 = vld [vmem:[%s1 + $0x8] sm:$0xff]
  %v42 = vld [vmem:[%s1 + $0x10] sm:$0xff]
  %v43 = vld [vmem:[%s1 + $0x18] sm:$0xff]
  %v44 = vld [vmem:[%s3] sm:$0x1]
  %v46 = vlaneseq
  %v47 = vshrl.u32 %v46, 7
  %v48 = vsub.s32 0, %v47
  %v49 = vrot.slane %v44, %v48
  %v59 = vrot.slane %v33, 7
  %vm60 = vcmask 1041409
  %v61 = vsel %vm60, %v59, %v32
  %v62 = vrot.slane %v34, 6
  %vm63 = vcmask 1042434
  %v64 = vsel %vm63, %v62, %v61
  %v65 = vrot.slane %v35, 5
  %vm66 = vcmask 1043459
  %v67 = vsel %vm66, %v65, %v64
  %v68 = vrot.slane %v36, 4
  %vm69 = vcmask 1044484
  %v70 = vsel %vm69, %v68, %v67
  %v71 = vrot.slane %v37, 3
  %vm72 = vcmask 1045509
  %v73 = vsel %vm72, %v71, %v70
  %v74 = vrot.slane %v38, 2
  %vm75 = vcmask 1046534
  %v76 = vsel %vm75, %v74, %v73
  %v77 = vrot.slane %v39, 1
  %vm78 = vcmask 1047559
  %v79 = vsel %vm78, %v77, %v76
  %vm80 = vcmask 261120
  %v81 = vsel %vm80, %v79, 0
  %83 = vmatprep.subr.mxu0 0.0
  %84 = vmatpush1.msra.mxu0 %v40
  %85 = vmatprep.subr.mxu0 0.0
  %86 = vmatpush1.msra.mxu0 %v41
  %87 = vmatprep.subr.mxu0 0.0
  %88 = vmatpush1.msra.mxu0 %v42
  %89 = vmatprep.subr.mxu0 0.0
  %90 = vmatpush1.msra.mxu0 %v43
  %91 = vmatprep.subr.mxu0 0.0
  %92 = vmatpush1.msra.mxu0 0.0
  %93 = vmatprep.subr.mxu0 0.0
  %94 = vmatpush1.msra.mxu0 0.0
  %95 = vmatprep.subr.mxu0 0.0
  %96 = vmatpush1.msra.mxu0 0.0
  %97 = vmatprep.subr.mxu0 0.0
  %98 = vmatpush1.msra.mxu0 0.0
  %99 = vmatprep.subr.mxu0 0.0
  %100 = vmatpush1.msra.mxu0 0.0
  %101 = vmatprep.subr.mxu0 0.0
  %102 = vmatpush1.msra.mxu0 0.0
  %103 = vmatprep.subr.mxu0 0.0
  %104 = vmatpush1.msra.mxu0 0.0
  %105 = vmatprep.subr.mxu0 0.0
  %106 = vmatpush1.msra.mxu0 0.0
  %107 = vmatprep.subr.mxu0 0.0
  %108 = vmatpush1.msra.mxu0 0.0
  %109 = vmatprep.subr.mxu0 0.0
  %110 = vmatpush1.msra.mxu0 0.0
  %111 = vmatprep.subr.mxu0 0.0
  %112 = vmatpush1.msra.mxu0 0.0
  %113 = vmatprep.subr.mxu0 0.0
  %114 = vmatpush1.msra.mxu0 0.0
  %115 = vmatprep.subr.mxu0 0.0
  %116 = vmatpush1.msra.mxu0 0.0
  %117 = vmatprep.subr.mxu0 0.0
  %118 = vmatpush1.msra.mxu0 0.0
  %119 = vmatprep.subr.mxu0 0.0
  %120 = vmatpush1.msra.mxu0 0.0
  %121 = vmatprep.subr.mxu0 0.0
  %122 = vmatpush1.msra.mxu0 0.0
  %123 = vmatprep.subr.mxu0 0.0
  %124 = vmatpush1.msra.mxu0 0.0
  %125 = vmatprep.subr.mxu0 0.0
  %126 = vmatpush1.msra.mxu0 0.0
  %127 = vmatprep.subr.mxu0 0.0
  %128 = vmatpush1.msra.mxu0 0.0
  %129 = vmatprep.subr.mxu0 0.0
  %130 = vmatpush1.msra.mxu0 0.0
  %131 = vmatprep.subr.mxu0 0.0
  %132 = vmatpush1.msra.mxu0 0.0
  %133 = vmatprep.subr.mxu0 0.0
  %134 = vmatpush1.msra.mxu0 0.0
  %135 = vmatprep.subr.mxu0 0.0
  %136 = vmatpush1.msra.mxu0 0.0
  %137 = vmatprep.subr.mxu0 0.0
  %138 = vmatpush1.msra.mxu0 0.0
  %139 = vmatprep.subr.mxu0 0.0
  %140 = vmatpush1.msra.mxu0 0.0
  %141 = vmatprep.subr.mxu0 0.0
  %142 = vmatpush1.msra.mxu0 0.0
  %143 = vmatprep.subr.mxu0 0.0
  %144 = vmatpush1.msra.mxu0 0.0
  %145 = vmatprep.subr.mxu0 0.0
  %146 = vmatpush1.msra.mxu0 0.0
  %147 = vmatprep.mubr.f32.mxu0 0.0
  %148 = vmatmul.mubr.f32.gmra.mrb[0].mxu0 %v81
  %v149 = vpop.f32.mrb[0].mxu0
  %v150 = vadd.f32 %v49, %v149
  %v151 = vpop.f32.mrb[0].mxu0
  %152 = vdwg.mxu0
  %v153 = vld [vmem:[%s2] sm:$0xff]
  %v154 = vld [vmem:[%s2 + $0x8] sm:$0xff]
  %v155 = vld [vmem:[%s2 + $0x10] sm:$0xff]
  %v156 = vld [vmem:[%s2 + $0x18] sm:$0xff]
  %v157 = vsel %vm80, %v32, 0
  %v159 = vsel %vm80, %v33, 0
  %v161 = vsel %vm80, %v34, 0
  %v163 = vsel %vm80, %v35, 0
  %v165 = vsel %vm80, %v36, 0
  %v167 = vsel %vm80, %v37, 0
  %v169 = vsel %vm80, %v38, 0
  %v171 = vsel %vm80, %v39, 0
  %173 = vmatprep.subr.mxu0 0.0
  %174 = vmatpush1.msra.mxu0 %v153
  %175 = vmatprep.subr.mxu0 0.0
  %176 = vmatpush1.msra.mxu0 %v154
  %177 = vmatprep.subr.mxu0 0.0
  %178 = vmatpush1.msra.mxu0 %v155
  %179 = vmatprep.subr.mxu0 0.0
  %180 = vmatpush1.msra.mxu0 %v156
  %181 = vmatprep.subr.mxu0 0.0
  %182 = vmatpush1.msra.mxu0 0.0
  %183 = vmatprep.subr.mxu0 0.0
  %184 = vmatpush1.msra.mxu0 0.0
  %185 = vmatprep.subr.mxu0 0.0
  %186 = vmatpush1.msra.mxu0 0.0
  %187 = vmatprep.subr.mxu0 0.0
  %188 = vmatpush1.msra.mxu0 0.0
  %189 = vmatprep.subr.mxu0 0.0
  %190 = vmatpush1.msra.mxu0 0.0
  %191 = vmatprep.subr.mxu0 0.0
  %192 = vmatpush1.msra.mxu0 0.0
  %193 = vmatprep.subr.mxu0 0.0
  %194 = vmatpush1.msra.mxu0 0.0
  %195 = vmatprep.subr.mxu0 0.0
  %196 = vmatpush1.msra.mxu0 0.0
  %197 = vmatprep.subr.mxu0 0.0
  %198 = vmatpush1.msra.mxu0 0.0
  %199 = vmatprep.subr.mxu0 0.0
  %200 = vmatpush1.msra.mxu0 0.0
  %201 = vmatprep.subr.mxu0 0.0
  %202 = vmatpush1.msra.mxu0 0.0
  %203 = vmatprep.subr.mxu0 0.0
  %204 = vmatpush1.msra.mxu0 0.0
  %205 = vmatprep.subr.mxu0 0.0
  %206 = vmatpush1.msra.mxu0 0.0
  %207 = vmatprep.subr.mxu0 0.0
  %208 = vmatpush1.msra.mxu0 0.0
  %209 = vmatprep.subr.mxu0 0.0
  %210 = vmatpush1.msra.mxu0 0.0
  %211 = vmatprep.subr.mxu0 0.0
  %212 = vmatpush1.msra.mxu0 0.0
  %213 = vmatprep.subr.mxu0 0.0
  %214 = vmatpush1.msra.mxu0 0.0
  %215 = vmatprep.subr.mxu0 0.0
  %216 = vmatpush1.msra.mxu0 0.0
  %217 = vmatprep.subr.mxu0 0.0
  %218 = vmatpush1.msra.mxu0 0.0
  %219 = vmatprep.subr.mxu0 0.0
  %220 = vmatpush1.msra.mxu0 0.0
  %221 = vmatprep.subr.mxu0 0.0
  %222 = vmatpush1.msra.mxu0 0.0
  %223 = vmatprep.subr.mxu0 0.0
  %224 = vmatpush1.msra.mxu0 0.0
  %225 = vmatprep.subr.mxu0 0.0
  %226 = vmatpush1.msra.mxu0 0.0
  %227 = vmatprep.subr.mxu0 0.0
  %228 = vmatpush1.msra.mxu0 0.0
  %229 = vmatprep.subr.mxu0 0.0
  %230 = vmatpush1.msra.mxu0 0.0
  %231 = vmatprep.subr.mxu0 0.0
  %232 = vmatpush1.msra.mxu0 0.0
  %233 = vmatprep.subr.mxu0 0.0
  %234 = vmatpush1.msra.mxu0 0.0
  %235 = vmatprep.subr.mxu0 0.0
  %236 = vmatpush1.msra.mxu0 0.0
  %237 = vmatprep.mubr.f32.mxu0 0.0
  %238 = vmatmul.mubr.f32.gmra.mrb[0].mxu0 %v157
  %v239 = vpop.f32.mrb[0].mxu0
  %v240 = vadd.f32 0.0, %v239
  %v241 = vpop.f32.mrb[0].mxu0
  %242 = vmatprep.mubr.f32.mxu0 0.0
  %243 = vmatmul.mubr.f32.gmra.mrb[0].mxu0 %v159
  %v244 = vpop.f32.mrb[0].mxu0
  %v245 = vadd.f32 0.0, %v244
  %v246 = vpop.f32.mrb[0].mxu0
  %247 = vmatprep.mubr.f32.mxu0 0.0
  %248 = vmatmul.mubr.f32.gmra.mrb[0].mxu0 %v161
  %v249 = vpop.f32.mrb[0].mxu0
  %v250 = vadd.f32 0.0, %v249
  %v251 = vpop.f32.mrb[0].mxu0
  %252 = vmatprep.mubr.f32.mxu0 0.0
  %253 = vmatmul.mubr.f32.gmra.mrb[0].mxu0 %v163
  %v254 = vpop.f32.mrb[0].mxu0
  %v255 = vadd.f32 0.0, %v254
  %v256 = vpop.f32.mrb[0].mxu0
  %257 = vmatprep.mubr.f32.mxu0 0.0
  %258 = vmatmul.mubr.f32.gmra.mrb[0].mxu0 %v165
  %v259 = vpop.f32.mrb[0].mxu0
  %v260 = vadd.f32 0.0, %v259
  %v261 = vpop.f32.mrb[0].mxu0
  %262 = vmatprep.mubr.f32.mxu0 0.0
  %263 = vmatmul.mubr.f32.gmra.mrb[0].mxu0 %v167
  %v264 = vpop.f32.mrb[0].mxu0
  %v265 = vadd.f32 0.0, %v264
  %v266 = vpop.f32.mrb[0].mxu0
  %267 = vmatprep.mubr.f32.mxu0 0.0
  %268 = vmatmul.mubr.f32.gmra.mrb[0].mxu0 %v169
  %v269 = vpop.f32.mrb[0].mxu0
  %v270 = vadd.f32 0.0, %v269
  %v271 = vpop.f32.mrb[0].mxu0
  %272 = vmatprep.mubr.f32.mxu0 0.0
  %273 = vmatmul.mubr.f32.gmra.mrb[0].mxu0 %v171
  %v274 = vpop.f32.mrb[0].mxu0
  %v275 = vadd.f32 0.0, %v274
  %v276 = vpop.f32.mrb[0].mxu0
  %277 = vdwg.mxu0
  %v279 = vcombine.high %v150, %v150
  %v281 = vunpack.c.l.s4 1966171168
  %v282 = vunpack.c.0.s8 %v281
  %v283 = vlaneseq
  %v284 = vshrl.u32 %v283, 7
  %v285 = vsub.s32 %v282, %v284
  %v286 = vrot.slane %v150, %v285
  %v288 = vunpack.c.l.s4 1966171168
  %v289 = vunpack.c.0.s8 %v288
  %v290 = vlaneseq
  %v291 = vshrl.u32 %v290, 7
  %v292 = vsub.s32 %v289, %v291
  %v293 = vrot.slane %v279, %v292
  %v294 = vcombine.high %v286, %v286
  %v295 = vcombine.high %v293, %v293
  %v297 = vunpack.c.l.s4 1966171168
  %v298 = vunpack.c.0.s8 %v297
  %v299 = vlaneseq
  %v300 = vshrl.u32 %v299, 7
  %v301 = vsub.s32 %v298, %v300
  %v302 = vrot.slane %v286, %v301
  %v304 = vunpack.c.l.s4 1966171168
  %v305 = vunpack.c.0.s8 %v304
  %v306 = vlaneseq
  %v307 = vshrl.u32 %v306, 7
  %v308 = vsub.s32 %v305, %v307
  %v309 = vrot.slane %v293, %v308
  %v311 = vunpack.c.l.s4 1966171168
  %v312 = vunpack.c.0.s8 %v311
  %v313 = vlaneseq
  %v314 = vshrl.u32 %v313, 7
  %v315 = vsub.s32 %v312, %v314
  %v316 = vrot.slane %v294, %v315
  %v318 = vunpack.c.l.s4 1966171168
  %v319 = vunpack.c.0.s8 %v318
  %v320 = vlaneseq
  %v321 = vshrl.u32 %v320, 7
  %v322 = vsub.s32 %v319, %v321
  %v323 = vrot.slane %v295, %v322
  %v324 = vcombine.high %v302, %v302
  %v325 = vcombine.high %v309, %v309
  %v326 = vcombine.high %v316, %v316
  %v327 = vcombine.high %v323, %v323
  %v328 = vlaneseq
  %v329 = vshrl.u32 %v328, 7
  %v330 = vsub.s32 0, %v329
  %v331 = vrot.slane %v302, %v330
  %v332 = vlaneseq
  %v333 = vshrl.u32 %v332, 7
  %v334 = vsub.s32 0, %v333
  %v335 = vrot.slane %v316, %v334
  %v336 = vlaneseq
  %v337 = vshrl.u32 %v336, 7
  %v338 = vsub.s32 0, %v337
  %v339 = vrot.slane %v324, %v338
  %v340 = vlaneseq
  %v341 = vshrl.u32 %v340, 7
  %v342 = vsub.s32 0, %v341
  %v343 = vrot.slane %v326, %v342
  %v344 = vlaneseq
  %v345 = vshrl.u32 %v344, 7
  %v346 = vsub.s32 0, %v345
  %v347 = vrot.slane %v309, %v346
  %v348 = vlaneseq
  %v349 = vshrl.u32 %v348, 7
  %v350 = vsub.s32 0, %v349
  %v351 = vrot.slane %v323, %v350
  %v352 = vlaneseq
  %v353 = vshrl.u32 %v352, 7
  %v354 = vsub.s32 0, %v353
  %v355 = vrot.slane %v325, %v354
  %v356 = vlaneseq
  %v357 = vshrl.u32 %v356, 7
  %v358 = vsub.s32 0, %v357
  %v359 = vrot.slane %v327, %v358
  %v368 = vadd.f32 %v240, %v331
  %v369 = vadd.f32 %v245, %v335
  %v370 = vadd.f32 %v250, %v339
  %v371 = vadd.f32 %v255, %v343
  %v372 = vadd.f32 %v260, %v347
  %v373 = vadd.f32 %v265, %v351
  %v374 = vadd.f32 %v270, %v355
  %v375 = vadd.f32 %v275, %v359
  %v376 = vtanh.pop %v368
  %v377 = vtanh.pop %v369
  %v378 = vtanh.pop %v370
  %v379 = vtanh.pop %v371
  %v380 = vtanh.pop %v372
  %v381 = vtanh.pop %v373
  %v382 = vtanh.pop %v374
  %v383 = vtanh.pop %v375
  %v384 = vld [vmem:[%s4] sm:$0x1]
  %v386 = vlaneseq
  %v387 = vshrl.u32 %v386, 7
  %v388 = vsub.s32 0, %v387
  %v389 = vrot.slane %v384, %v388
  %v391 = vmul.f32 %v376, %v389
  %v392 = vmul.f32 %v377, %v389
  %v393 = vmul.f32 %v378, %v389
  %v394 = vmul.f32 %v379, %v389
  %v395 = vmul.f32 %v380, %v389
  %v396 = vmul.f32 %v381, %v389
  %v397 = vmul.f32 %v382, %v389
  %v398 = vmul.f32 %v383, %v389
  %v399 = vsel %vm80, %v391, 0.0
  %400 = vadd.xlane.f32.xlu0 %v399
  %v401 = vpop.xlane.xlu0 %400
  %v402 = vsel %vm80, %v392, 0.0
  %403 = vadd.xlane.f32.xlu0 %v402
  %v404 = vpop.xlane.xlu0 %403
  %v405 = vsel %vm80, %v393, 0.0
  %406 = vadd.xlane.f32.xlu0 %v405
  %v407 = vpop.xlane.xlu0 %406
  %v408 = vsel %vm80, %v394, 0.0
  %409 = vadd.xlane.f32.xlu0 %v408
  %v410 = vpop.xlane.xlu0 %409
  %v411 = vsel %vm80, %v395, 0.0
  %412 = vadd.xlane.f32.xlu0 %v411
  %v413 = vpop.xlane.xlu0 %412
  %v414 = vsel %vm80, %v396, 0.0
  %415 = vadd.xlane.f32.xlu0 %v414
  %v416 = vpop.xlane.xlu0 %415
  %v417 = vsel %vm80, %v397, 0.0
  %418 = vadd.xlane.f32.xlu0 %v417
  %v419 = vpop.xlane.xlu0 %418
  %v420 = vsel %vm80, %v398, 0.0
  %421 = vadd.xlane.f32.xlu0 %v420
  %v422 = vpop.xlane.xlu0 %421
  %v423 = vrot.slane %v401, 4
  %v424 = vmax.f32 %v401, %v423
  %v425 = vrot.slane %v424, 2
  %v426 = vmax.f32 %v424, %v425
  %v427 = vrot.slane %v426, 1
  %v428 = vmax.f32 %v426, %v427
  %v429 = vrot.slane %v404, 4
  %v430 = vmax.f32 %v404, %v429
  %v431 = vrot.slane %v430, 2
  %v432 = vmax.f32 %v430, %v431
  %v433 = vrot.slane %v432, 1
  %v434 = vmax.f32 %v432, %v433
  %v435 = vrot.slane %v407, 4
  %v436 = vmax.f32 %v407, %v435
  %v437 = vrot.slane %v436, 2
  %v438 = vmax.f32 %v436, %v437
  %v439 = vrot.slane %v438, 1
  %v440 = vmax.f32 %v438, %v439
  %v441 = vrot.slane %v410, 4
  %v442 = vmax.f32 %v410, %v441
  %v443 = vrot.slane %v442, 2
  %v444 = vmax.f32 %v442, %v443
  %v445 = vrot.slane %v444, 1
  %v446 = vmax.f32 %v444, %v445
  %v447 = vrot.slane %v413, 4
  %v448 = vmax.f32 %v413, %v447
  %v449 = vrot.slane %v448, 2
  %v450 = vmax.f32 %v448, %v449
  %v451 = vrot.slane %v450, 1
  %v452 = vmax.f32 %v450, %v451
  %v453 = vrot.slane %v416, 4
  %v454 = vmax.f32 %v416, %v453
  %v455 = vrot.slane %v454, 2
  %v456 = vmax.f32 %v454, %v455
  %v457 = vrot.slane %v456, 1
  %v458 = vmax.f32 %v456, %v457
  %v459 = vrot.slane %v419, 4
  %v460 = vmax.f32 %v419, %v459
  %v461 = vrot.slane %v460, 2
  %v462 = vmax.f32 %v460, %v461
  %v463 = vrot.slane %v462, 1
  %v464 = vmax.f32 %v462, %v463
  %v465 = vrot.slane %v422, 4
  %v466 = vmax.f32 %v422, %v465
  %v467 = vrot.slane %v466, 2
  %v468 = vmax.f32 %v466, %v467
  %v469 = vrot.slane %v468, 1
  %v470 = vmax.f32 %v468, %v469
  %v471 = vsub.f32 %v401, %v428
  %v472 = vsub.f32 %v404, %v434
  %v473 = vsub.f32 %v407, %v440
  %v474 = vsub.f32 %v410, %v446
  %v475 = vsub.f32 %v413, %v452
  %v476 = vsub.f32 %v416, %v458
  %v477 = vsub.f32 %v419, %v464
  %v478 = vsub.f32 %v422, %v470
  %v479 = vmul.f32 %v471, 1.442695
  %v480 = vpow.pop %v479
  %v481 = vmul.f32 %v472, 1.442695
  %v482 = vpow.pop %v481
  %v483 = vmul.f32 %v473, 1.442695
  %v484 = vpow.pop %v483
  %v485 = vmul.f32 %v474, 1.442695
  %v486 = vpow.pop %v485
  %v487 = vmul.f32 %v475, 1.442695
  %v488 = vpow.pop %v487
  %v489 = vmul.f32 %v476, 1.442695
  %v490 = vpow.pop %v489
  %v491 = vmul.f32 %v477, 1.442695
  %v492 = vpow.pop %v491
  %v493 = vmul.f32 %v478, 1.442695
  %v494 = vpow.pop %v493
  %v495 = vrot.slane %v480, 4
  %v496 = vadd.f32 %v480, %v495
  %v497 = vrot.slane %v496, 2
  %v498 = vadd.f32 %v496, %v497
  %v499 = vrot.slane %v498, 1
  %v500 = vadd.f32 %v498, %v499
  %v501 = vrot.slane %v482, 4
  %v502 = vadd.f32 %v482, %v501
  %v503 = vrot.slane %v502, 2
  %v504 = vadd.f32 %v502, %v503
  %v505 = vrot.slane %v504, 1
  %v506 = vadd.f32 %v504, %v505
  %v507 = vrot.slane %v484, 4
  %v508 = vadd.f32 %v484, %v507
  %v509 = vrot.slane %v508, 2
  %v510 = vadd.f32 %v508, %v509
  %v511 = vrot.slane %v510, 1
  %v512 = vadd.f32 %v510, %v511
  %v513 = vrot.slane %v486, 4
  %v514 = vadd.f32 %v486, %v513
  %v515 = vrot.slane %v514, 2
  %v516 = vadd.f32 %v514, %v515
  %v517 = vrot.slane %v516, 1
  %v518 = vadd.f32 %v516, %v517
  %v519 = vrot.slane %v488, 4
  %v520 = vadd.f32 %v488, %v519
  %v521 = vrot.slane %v520, 2
  %v522 = vadd.f32 %v520, %v521
  %v523 = vrot.slane %v522, 1
  %v524 = vadd.f32 %v522, %v523
  %v525 = vrot.slane %v490, 4
  %v526 = vadd.f32 %v490, %v525
  %v527 = vrot.slane %v526, 2
  %v528 = vadd.f32 %v526, %v527
  %v529 = vrot.slane %v528, 1
  %v530 = vadd.f32 %v528, %v529
  %v531 = vrot.slane %v492, 4
  %v532 = vadd.f32 %v492, %v531
  %v533 = vrot.slane %v532, 2
  %v534 = vadd.f32 %v532, %v533
  %v535 = vrot.slane %v534, 1
  %v536 = vadd.f32 %v534, %v535
  %v537 = vrot.slane %v494, 4
  %v538 = vadd.f32 %v494, %v537
  %v539 = vrot.slane %v538, 2
  %v540 = vadd.f32 %v538, %v539
  %v541 = vrot.slane %v540, 1
  %v542 = vadd.f32 %v540, %v541
  %v543 = vrcp.pop %v500
  %v544 = vmul.f32 %v480, %v543
  %v545 = vrcp.pop %v506
  %v546 = vmul.f32 %v482, %v545
  %v547 = vrcp.pop %v512
  %v548 = vmul.f32 %v484, %v547
  %v549 = vrcp.pop %v518
  %v550 = vmul.f32 %v486, %v549
  %v551 = vrcp.pop %v524
  %v552 = vmul.f32 %v488, %v551
  %v553 = vrcp.pop %v530
  %v554 = vmul.f32 %v490, %v553
  %v555 = vrcp.pop %v536
  %v556 = vmul.f32 %v492, %v555
  %v557 = vrcp.pop %v542
  %v558 = vmul.f32 %v494, %v557
  %v559 = vmul.f32 %v544, %v32
  %v560 = vmul.f32 %v546, %v33
  %v561 = vmul.f32 %v548, %v34
  %v562 = vmul.f32 %v550, %v35
  %v563 = vmul.f32 %v552, %v36
  %v564 = vmul.f32 %v554, %v37
  %v565 = vmul.f32 %v556, %v38
  %v566 = vmul.f32 %v558, %v39
  %v567 = vsel %vm80, %v559, 0.0
  %v568 = vrot.slane %v567, 4
  %v569 = vadd.f32 %v567, %v568
  %v570 = vrot.slane %v569, 2
  %v571 = vadd.f32 %v569, %v570
  %v572 = vrot.slane %v571, 1
  %v573 = vadd.f32 %v571, %v572
  %v574 = vsel %vm80, %v560, 0.0
  %v575 = vrot.slane %v574, 4
  %v576 = vadd.f32 %v574, %v575
  %v577 = vrot.slane %v576, 2
  %v578 = vadd.f32 %v576, %v577
  %v579 = vrot.slane %v578, 1
  %v580 = vadd.f32 %v578, %v579
  %v581 = vsel %vm80, %v561, 0.0
  %v582 = vrot.slane %v581, 4
  %v583 = vadd.f32 %v581, %v582
  %v584 = vrot.slane %v583, 2
  %v585 = vadd.f32 %v583, %v584
  %v586 = vrot.slane %v585, 1
  %v587 = vadd.f32 %v585, %v586
  %v588 = vsel %vm80, %v562, 0.0
  %v589 = vrot.slane %v588, 4
  %v590 = vadd.f32 %v588, %v589
  %v591 = vrot.slane %v590, 2
  %v592 = vadd.f32 %v590, %v591
  %v593 = vrot.slane %v592, 1
  %v594 = vadd.f32 %v592, %v593
  %v595 = vsel %vm80, %v563, 0.0
  %v596 = vrot.slane %v595, 4
  %v597 = vadd.f32 %v595, %v596
  %v598 = vrot.slane %v597, 2
  %v599 = vadd.f32 %v597, %v598
  %v600 = vrot.slane %v599, 1
  %v601 = vadd.f32 %v599, %v600
  %v602 = vsel %vm80, %v564, 0.0
  %v603 = vrot.slane %v602, 4
  %v604 = vadd.f32 %v602, %v603
  %v605 = vrot.slane %v604, 2
  %v606 = vadd.f32 %v604, %v605
  %v607 = vrot.slane %v606, 1
  %v608 = vadd.f32 %v606, %v607
  %v609 = vsel %vm80, %v565, 0.0
  %v610 = vrot.slane %v609, 4
  %v611 = vadd.f32 %v609, %v610
  %v612 = vrot.slane %v611, 2
  %v613 = vadd.f32 %v611, %v612
  %v614 = vrot.slane %v613, 1
  %v615 = vadd.f32 %v613, %v614
  %v616 = vsel %vm80, %v566, 0.0
  %v617 = vrot.slane %v616, 4
  %v618 = vadd.f32 %v616, %v617
  %v619 = vrot.slane %v618, 2
  %v620 = vadd.f32 %v618, %v619
  %v621 = vrot.slane %v620, 1
  %v622 = vadd.f32 %v620, %v621
  %v623 = vld [vmem:[%s5] sm:$0xff]
  %v624 = vld [vmem:[%s5 + $0x8] sm:$0xff]
  %v625 = vld [vmem:[%s5 + $0x10] sm:$0xff]
  %v626 = vld [vmem:[%s5 + $0x18] sm:$0xff]
  %v627 = vld [vmem:[%s6] sm:$0x1]
  %v629 = vlaneseq
  %v630 = vshrl.u32 %v629, 7
  %v631 = vsub.s32 0, %v630
  %v632 = vrot.slane %v627, %v631
  %v642 = vsel %vm60, %v580, %v573
  %v643 = vsel %vm63, %v587, %v642
  %v644 = vsel %vm66, %v594, %v643
  %v645 = vsel %vm69, %v601, %v644
  %v646 = vsel %vm72, %v608, %v645
  %v647 = vsel %vm75, %v615, %v646
  %v648 = vsel %vm78, %v622, %v647
  %v649 = vsel %vm80, %v648, 0
  %651 = vmatprep.subr.mxu0 0.0
  %652 = vmatpush1.msra.mxu0 %v623
  %653 = vmatprep.subr.mxu0 0.0
  %654 = vmatpush1.msra.mxu0 %v624
  %655 = vmatprep.subr.mxu0 0.0
  %656 = vmatpush1.msra.mxu0 %v625
  %657 = vmatprep.subr.mxu0 0.0
  %658 = vmatpush1.msra.mxu0 %v626
  %659 = vmatprep.subr.mxu0 0.0
  %660 = vmatpush1.msra.mxu0 0.0
  %661 = vmatprep.subr.mxu0 0.0
  %662 = vmatpush1.msra.mxu0 0.0
  %663 = vmatprep.subr.mxu0 0.0
  %664 = vmatpush1.msra.mxu0 0.0
  %665 = vmatprep.subr.mxu0 0.0
  %666 = vmatpush1.msra.mxu0 0.0
  %667 = vmatprep.subr.mxu0 0.0
  %668 = vmatpush1.msra.mxu0 0.0
  %669 = vmatprep.subr.mxu0 0.0
  %670 = vmatpush1.msra.mxu0 0.0
  %671 = vmatprep.subr.mxu0 0.0
  %672 = vmatpush1.msra.mxu0 0.0
  %673 = vmatprep.subr.mxu0 0.0
  %674 = vmatpush1.msra.mxu0 0.0
  %675 = vmatprep.subr.mxu0 0.0
  %676 = vmatpush1.msra.mxu0 0.0
  %677 = vmatprep.subr.mxu0 0.0
  %678 = vmatpush1.msra.mxu0 0.0
  %679 = vmatprep.subr.mxu0 0.0
  %680 = vmatpush1.msra.mxu0 0.0
  %681 = vmatprep.subr.mxu0 0.0
  %682 = vmatpush1.msra.mxu0 0.0
  %683 = vmatprep.subr.mxu0 0.0
  %684 = vmatpush1.msra.mxu0 0.0
  %685 = vmatprep.subr.mxu0 0.0
  %686 = vmatpush1.msra.mxu0 0.0
  %687 = vmatprep.subr.mxu0 0.0
  %688 = vmatpush1.msra.mxu0 0.0
  %689 = vmatprep.subr.mxu0 0.0
  %690 = vmatpush1.msra.mxu0 0.0
  %691 = vmatprep.subr.mxu0 0.0
  %692 = vmatpush1.msra.mxu0 0.0
  %693 = vmatprep.subr.mxu0 0.0
  %694 = vmatpush1.msra.mxu0 0.0
  %695 = vmatprep.subr.mxu0 0.0
  %696 = vmatpush1.msra.mxu0 0.0
  %697 = vmatprep.subr.mxu0 0.0
  %698 = vmatpush1.msra.mxu0 0.0
  %699 = vmatprep.subr.mxu0 0.0
  %700 = vmatpush1.msra.mxu0 0.0
  %701 = vmatprep.subr.mxu0 0.0
  %702 = vmatpush1.msra.mxu0 0.0
  %703 = vmatprep.subr.mxu0 0.0
  %704 = vmatpush1.msra.mxu0 0.0
  %705 = vmatprep.subr.mxu0 0.0
  %706 = vmatpush1.msra.mxu0 0.0
  %707 = vmatprep.subr.mxu0 0.0
  %708 = vmatpush1.msra.mxu0 0.0
  %709 = vmatprep.subr.mxu0 0.0
  %710 = vmatpush1.msra.mxu0 0.0
  %711 = vmatprep.subr.mxu0 0.0
  %712 = vmatpush1.msra.mxu0 0.0
  %713 = vmatprep.subr.mxu0 0.0
  %714 = vmatpush1.msra.mxu0 0.0
  %715 = vmatprep.mubr.f32.mxu0 0.0
  %716 = vmatmul.mubr.f32.gmra.mrb[0].mxu0 %v649
  %v717 = vpop.f32.mrb[0].mxu0
  %v718 = vadd.f32 %v632, %v717
  %v719 = vpop.f32.mrb[0].mxu0
  %720 = vdwg.mxu0
  %v721 = vxor.u32 %v718, 2147483648
  %v722 = vmul.f32 %v721, 1.442695
  %v723 = vpow.pop %v722
  %v724 = vadd.f32 %v723, 1.0
  %v725 = vrcp.pop %v724
  %v726 = vmul.f32 1.0, %v725
  %v727 = vtanh.pop %v718
  %729 = vrot.lane.b32.xlu0 %v727, 96
  %v730 = vpop.permute.xlu0 %729
  %v732 = vmul.f32 %v726, %v730
  %v733 = vtanh.pop %v732
  %735 = vrot.lane.b32.xlu0 %v733, 64
  %v736 = vpop.permute.xlu0 %735
  %v738 = vmul.f32 %v726, %v736
  %v739 = vld [vmem:[%s7] sm:$0xff]
  %v740 = vld [vmem:[%s7 + $0x8] sm:$0xff]
  %v741 = vld [vmem:[%s7 + $0x10] sm:$0xff]
  %v742 = vld [vmem:[%s7 + $0x18] sm:$0xff]
  %v743 = vld [vmem:[%s8] sm:$0x1]
  %v745 = vlaneseq
  %v746 = vshrl.u32 %v745, 7
  %v747 = vsub.s32 0, %v746
  %v748 = vrot.slane %v743, %v747
  %751 = vrot.lane.b32.xlu0 %v738, 64
  %v752 = vpop.permute.xlu0 %751
  %v753 = vsel %vm80, %v752, 0
  %755 = vmatprep.subr.mxu0 0.0
  %756 = vmatpush1.msra.mxu0 %v739
  %757 = vmatprep.subr.mxu0 0.0
  %758 = vmatpush1.msra.mxu0 %v740
  %759 = vmatprep.subr.mxu0 0.0
  %760 = vmatpush1.msra.mxu0 %v741
  %761 = vmatprep.subr.mxu0 0.0
  %762 = vmatpush1.msra.mxu0 %v742
  %763 = vmatprep.subr.mxu0 0.0
  %764 = vmatpush1.msra.mxu0 0.0
  %765 = vmatprep.subr.mxu0 0.0
  %766 = vmatpush1.msra.mxu0 0.0
  %767 = vmatprep.subr.mxu0 0.0
  %768 = vmatpush1.msra.mxu0 0.0
  %769 = vmatprep.subr.mxu0 0.0
  %770 = vmatpush1.msra.mxu0 0.0
  %771 = vmatprep.subr.mxu0 0.0
  %772 = vmatpush1.msra.mxu0 0.0
  %773 = vmatprep.subr.mxu0 0.0
  %774 = vmatpush1.msra.mxu0 0.0
  %775 = vmatprep.subr.mxu0 0.0
  %776 = vmatpush1.msra.mxu0 0.0
  %777 = vmatprep.subr.mxu0 0.0
  %778 = vmatpush1.msra.mxu0 0.0
  %779 = vmatprep.subr.mxu0 0.0
  %780 = vmatpush1.msra.mxu0 0.0
  %781 = vmatprep.subr.mxu0 0.0
  %782 = vmatpush1.msra.mxu0 0.0
  %783 = vmatprep.subr.mxu0 0.0
  %784 = vmatpush1.msra.mxu0 0.0
  %785 = vmatprep.subr.mxu0 0.0
  %786 = vmatpush1.msra.mxu0 0.0
  %787 = vmatprep.subr.mxu0 0.0
  %788 = vmatpush1.msra.mxu0 0.0
  %789 = vmatprep.subr.mxu0 0.0
  %790 = vmatpush1.msra.mxu0 0.0
  %791 = vmatprep.subr.mxu0 0.0
  %792 = vmatpush1.msra.mxu0 0.0
  %793 = vmatprep.subr.mxu0 0.0
  %794 = vmatpush1.msra.mxu0 0.0
  %795 = vmatprep.subr.mxu0 0.0
  %796 = vmatpush1.msra.mxu0 0.0
  %797 = vmatprep.subr.mxu0 0.0
  %798 = vmatpush1.msra.mxu0 0.0
  %799 = vmatprep.subr.mxu0 0.0
  %800 = vmatpush1.msra.mxu0 0.0
  %801 = vmatprep.subr.mxu0 0.0
  %802 = vmatpush1.msra.mxu0 0.0
  %803 = vmatprep.subr.mxu0 0.0
  %804 = vmatpush1.msra.mxu0 0.0
  %805 = vmatprep.subr.mxu0 0.0
  %806 = vmatpush1.msra.mxu0 0.0
  %807 = vmatprep.subr.mxu0 0.0
  %808 = vmatpush1.msra.mxu0 0.0
  %809 = vmatprep.subr.mxu0 0.0
  %810 = vmatpush1.msra.mxu0 0.0
  %811 = vmatprep.subr.mxu0 0.0
  %812 = vmatpush1.msra.mxu0 0.0
  %813 = vmatprep.subr.mxu0 0.0
  %814 = vmatpush1.msra.mxu0 0.0
  %815 = vmatprep.subr.mxu0 0.0
  %816 = vmatpush1.msra.mxu0 0.0
  %817 = vmatprep.subr.mxu0 0.0
  %818 = vmatpush1.msra.mxu0 0.0
  %819 = vmatprep.mubr.f32.mxu0 0.0
  %820 = vmatmul.mubr.f32.gmra.mrb[0].mxu0 %v753
  %v821 = vpop.f32.mrb[0].mxu0
  %v822 = vadd.f32 %v748, %v821
  %v823 = vpop.f32.mrb[0].mxu0
  %824 = vdwg.mxu0
  %825 = vst [vmem:[%s9] sm:$0xff] %v822
  // Predicated region
  $region38: #{_scoring_forward.1} parent=0 // pred_check
    _
  $region39: #{_scoring_forward.1} parent=0 // pred_check_branch
    %827 = sbr.rel (0) target = $region41
  $region40: #{_scoring_forward.1} parent=0 // pred_region
    _
  $region41: #{_scoring_forward.1} parent=0 // pred_fallthru
    _
  // Predicated region
  $region42: #{_scoring_forward.1} parent=0 // pred_check
    _
  $region43: #{_scoring_forward.1} parent=0 // pred_check_branch
    %829 = sbr.rel (0) target = $region45
  $region44: #{_scoring_forward.1} parent=0 // pred_region
    _
  $region45: #{_scoring_forward.1} parent=0 // pred_fallthru
    _

// kernel: _scoring_forward.1
$region0: #{_scoring_forward.1}
  #allocation0 [shape = 'u32[]', space=smem, size = 0x4, offset = 0x4, fixed_abs, tag = 'smem constant byte address 0x4 - core index']
  #allocation1 [shape = 'u32[144,128]{1,0:T(1,128)}', space=vmem, size = 0x12000, scoped, tag = 'internal scratch']
  %s0 = inlined_call_operand.vmem [shape: f32[8,8,32], index: 0, kind: input, shape index: {}]
  %s1 = inlined_call_operand.vmem [shape: f32[32,32], index: 1, kind: input, shape index: {}]
  %s2 = inlined_call_operand.vmem [shape: f32[32,32], index: 2, kind: input, shape index: {}]
  %s3 = inlined_call_operand.vmem [shape: f32[1,32], index: 3, kind: input, shape index: {}]
  %s4 = inlined_call_operand.vmem [shape: f32[1,32], index: 4, kind: input, shape index: {}]
  %s5 = inlined_call_operand.vmem [shape: f32[32,96], index: 5, kind: input, shape index: {}]
  %s6 = inlined_call_operand.vmem [shape: f32[1,96], index: 6, kind: input, shape index: {}]
  %s7 = inlined_call_operand.vmem [shape: f32[32,128], index: 7, kind: input, shape index: {}]
  %s8 = inlined_call_operand.vmem [shape: f32[1,128], index: 8, kind: input, shape index: {}]
  %s9 = inlined_call_operand.vmem [shape: f32[8,128], index: 9, kind: output, shape index: {}]
  %s10 = sld [smem:[#allocation0]]
  $region46: #{_scoring_forward.1} parent=0
    _
  %s12 = ssub.s32 1, %s10
  %s13 = scalar_select 0, %s12, %s10
  // Predicated region
  $region2: #{_scoring_forward.1} parent=0 // pred_check
    _
  $region3: #{_scoring_forward.1} parent=0 // pred_check_branch
    %15 = sbr.rel (0) target = $region5
  $region4: #{_scoring_forward.1} parent=0 // pred_region
    _
  $region5: #{_scoring_forward.1} parent=0 // pred_fallthru
    _
  // Predicated region
  $region6: #{_scoring_forward.1} parent=0 // pred_check
    _
  $region7: #{_scoring_forward.1} parent=0 // pred_check_branch
    %17 = sbr.rel (0) target = $region9
  $region8: #{_scoring_forward.1} parent=0 // pred_region
    _
  $region9: #{_scoring_forward.1} parent=0 // pred_fallthru
    _
  // Predicated region
  $region10: #{_scoring_forward.1} parent=0 // pred_check
    _
  $region11: #{_scoring_forward.1} parent=0 // pred_check_branch
    %19 = sbr.rel (0) target = $region13
  $region12: #{_scoring_forward.1} parent=0 // pred_region
    _
  $region13: #{_scoring_forward.1} parent=0 // pred_fallthru
    _
  // Predicated region
  $region14: #{_scoring_forward.1} parent=0 // pred_check
    _
  $region15: #{_scoring_forward.1} parent=0 // pred_check_branch
    %21 = sbr.rel (0) target = $region17
  $region16: #{_scoring_forward.1} parent=0 // pred_region
    _
  $region17: #{_scoring_forward.1} parent=0 // pred_fallthru
    _
  // Predicated region
  $region18: #{_scoring_forward.1} parent=0 // pred_check
    _
  $region19: #{_scoring_forward.1} parent=0 // pred_check_branch
    %23 = sbr.rel (0) target = $region21
  $region20: #{_scoring_forward.1} parent=0 // pred_region
    _
  $region21: #{_scoring_forward.1} parent=0 // pred_fallthru
    _
  // Predicated region
  $region22: #{_scoring_forward.1} parent=0 // pred_check
    _
  $region23: #{_scoring_forward.1} parent=0 // pred_check_branch
    %25 = sbr.rel (0) target = $region25
  $region24: #{_scoring_forward.1} parent=0 // pred_region
    _
  $region25: #{_scoring_forward.1} parent=0 // pred_fallthru
    _
  // Predicated region
  $region26: #{_scoring_forward.1} parent=0 // pred_check
    _
  $region27: #{_scoring_forward.1} parent=0 // pred_check_branch
    %27 = sbr.rel (0) target = $region29
  $region28: #{_scoring_forward.1} parent=0 // pred_region
    _
  $region29: #{_scoring_forward.1} parent=0 // pred_fallthru
    _
  // Predicated region
  $region30: #{_scoring_forward.1} parent=0 // pred_check
    _
  $region31: #{_scoring_forward.1} parent=0 // pred_check_branch
    %29 = sbr.rel (0) target = $region33
  $region32: #{_scoring_forward.1} parent=0 // pred_region
    _
  $region33: #{_scoring_forward.1} parent=0 // pred_fallthru
    _
  // Predicated region
  $region34: #{_scoring_forward.1} parent=0 // pred_check
    _
  $region35: #{_scoring_forward.1} parent=0 // pred_check_branch
    %31 = sbr.rel (0) target = $region37
  $region36: #{_scoring_forward.1} parent=0 // pred_region
    _
  $region37: #{_scoring_forward.1} parent=0 // pred_fallthru
    _
  %v32 = vld [vmem:[%s0] sm:$0xff]
  %v33 = vld [vmem:[%s0 + $0x8] sm:$0xff]
  %v34 = vld [vmem:[%s0 + $0x10] sm:$0xff]
  %v35 = vld [vmem:[%s0 + $0x18] sm:$0xff]
  %v36 = vld [vmem:[%s0 + $0x20] sm:$0xff]
  %v37 = vld [vmem:[%s0 + $0x28] sm:$0xff]
  %v38 = vld [vmem:[%s0 + $0x30] sm:$0xff]
  %v39 = vld [vmem:[%s0 + $0x38] sm:$0xff]
  %v40 = vld [vmem:[%s1] sm:$0xff]
  %v41 = vld [vmem:[%s1 + $0x8] sm:$0xff]
  %v42 = vld [vmem:[%s1 + $0x10] sm:$0xff]
  %v43 = vld [vmem:[%s1 + $0x18] sm:$0xff]
  %v44 = vld [vmem:[%s3] sm:$0x1]
  %v46 = vlaneseq
  %v47 = vshrl.u32 %v46, 7
  %v48 = vsub.s32 0, %v47
  %v49 = vrot.slane %v44, %v48
  %v59 = vrot.slane %v33, 7
  %vm60 = vcmask 1041409
  %v61 = vsel %vm60, %v59, %v32
  %v62 = vrot.slane %v34, 6
  %vm63 = vcmask 1042434
  %v64 = vsel %vm63, %v62, %v61
  %v65 = vrot.slane %v35, 5
  %vm66 = vcmask 1043459
  %v67 = vsel %vm66, %v65, %v64
  %v68 = vrot.slane %v36, 4
  %vm69 = vcmask 1044484
  %v70 = vsel %vm69, %v68, %v67
  %v71 = vrot.slane %v37, 3
  %vm72 = vcmask 1045509
  %v73 = vsel %vm72, %v71, %v70
  %v74 = vrot.slane %v38, 2
  %vm75 = vcmask 1046534
  %v76 = vsel %vm75, %v74, %v73
  %v77 = vrot.slane %v39, 1
  %vm78 = vcmask 1047559
  %v79 = vsel %vm78, %v77, %v76
  %vm80 = vcmask 261120
  %v81 = vsel %vm80, %v79, 0
  %83 = vmatprep.subr.mxu0 0.0
  %84 = vmatpush1.msra.mxu0 %v40
  %85 = vmatprep.subr.mxu0 0.0
  %86 = vmatpush1.msra.mxu0 %v41
  %87 = vmatprep.subr.mxu0 0.0
  %88 = vmatpush1.msra.mxu0 %v42
  %89 = vmatprep.subr.mxu0 0.0
  %90 = vmatpush1.msra.mxu0 %v43
  %91 = vmatprep.subr.mxu0 0.0
  %92 = vmatpush1.msra.mxu0 0.0
  %93 = vmatprep.subr.mxu0 0.0
  %94 = vmatpush1.msra.mxu0 0.0
  %95 = vmatprep.subr.mxu0 0.0
  %96 = vmatpush1.msra.mxu0 0.0
  %97 = vmatprep.subr.mxu0 0.0
  %98 = vmatpush1.msra.mxu0 0.0
  %99 = vmatprep.subr.mxu0 0.0
  %100 = vmatpush1.msra.mxu0 0.0
  %101 = vmatprep.subr.mxu0 0.0
  %102 = vmatpush1.msra.mxu0 0.0
  %103 = vmatprep.subr.mxu0 0.0
  %104 = vmatpush1.msra.mxu0 0.0
  %105 = vmatprep.subr.mxu0 0.0
  %106 = vmatpush1.msra.mxu0 0.0
  %107 = vmatprep.subr.mxu0 0.0
  %108 = vmatpush1.msra.mxu0 0.0
  %109 = vmatprep.subr.mxu0 0.0
  %110 = vmatpush1.msra.mxu0 0.0
  %111 = vmatprep.subr.mxu0 0.0
  %112 = vmatpush1.msra.mxu0 0.0
  %113 = vmatprep.subr.mxu0 0.0
  %114 = vmatpush1.msra.mxu0 0.0
  %115 = vmatprep.subr.mxu0 0.0
  %116 = vmatpush1.msra.mxu0 0.0
  %117 = vmatprep.subr.mxu0 0.0
  %118 = vmatpush1.msra.mxu0 0.0
  %119 = vmatprep.subr.mxu0 0.0
  %120 = vmatpush1.msra.mxu0 0.0
  %121 = vmatprep.subr.mxu0 0.0
  %122 = vmatpush1.msra.mxu0 0.0
  %123 = vmatprep.subr.mxu0 0.0
  %124 = vmatpush1.msra.mxu0 0.0
  %125 = vmatprep.subr.mxu0 0.0
  %126 = vmatpush1.msra.mxu0 0.0
  %127 = vmatprep.subr.mxu0 0.0
  %128 = vmatpush1.msra.mxu0 0.0
  %129 = vmatprep.subr.mxu0 0.0
  %130 = vmatpush1.msra.mxu0 0.0
  %131 = vmatprep.subr.mxu0 0.0
  %132 = vmatpush1.msra.mxu0 0.0
  %133 = vmatprep.subr.mxu0 0.0
  %134 = vmatpush1.msra.mxu0 0.0
  %135 = vmatprep.subr.mxu0 0.0
  %136 = vmatpush1.msra.mxu0 0.0
  %137 = vmatprep.subr.mxu0 0.0
  %138 = vmatpush1.msra.mxu0 0.0
  %139 = vmatprep.subr.mxu0 0.0
  %140 = vmatpush1.msra.mxu0 0.0
  %141 = vmatprep.subr.mxu0 0.0
  %142 = vmatpush1.msra.mxu0 0.0
  %143 = vmatprep.subr.mxu0 0.0
  %144 = vmatpush1.msra.mxu0 0.0
  %145 = vmatprep.subr.mxu0 0.0
  %146 = vmatpush1.msra.mxu0 0.0
  %147 = vmatprep.mubr.f32.mxu0 0.0
  %148 = vmatmul.mubr.f32.gmra.mrb[0].mxu0 %v81
  %v149 = vpop.f32.mrb[0].mxu0
  %v150 = vadd.f32 %v49, %v149
  %v151 = vpop.f32.mrb[0].mxu0
  %152 = vdwg.mxu0
  %v153 = vld [vmem:[%s2] sm:$0xff]
  %v154 = vld [vmem:[%s2 + $0x8] sm:$0xff]
  %v155 = vld [vmem:[%s2 + $0x10] sm:$0xff]
  %v156 = vld [vmem:[%s2 + $0x18] sm:$0xff]
  %v157 = vsel %vm80, %v32, 0
  %v159 = vsel %vm80, %v33, 0
  %v161 = vsel %vm80, %v34, 0
  %v163 = vsel %vm80, %v35, 0
  %v165 = vsel %vm80, %v36, 0
  %v167 = vsel %vm80, %v37, 0
  %v169 = vsel %vm80, %v38, 0
  %v171 = vsel %vm80, %v39, 0
  %173 = vmatprep.subr.mxu0 0.0
  %174 = vmatpush1.msra.mxu0 %v153
  %175 = vmatprep.subr.mxu0 0.0
  %176 = vmatpush1.msra.mxu0 %v154
  %177 = vmatprep.subr.mxu0 0.0
  %178 = vmatpush1.msra.mxu0 %v155
  %179 = vmatprep.subr.mxu0 0.0
  %180 = vmatpush1.msra.mxu0 %v156
  %181 = vmatprep.subr.mxu0 0.0
  %182 = vmatpush1.msra.mxu0 0.0
  %183 = vmatprep.subr.mxu0 0.0
  %184 = vmatpush1.msra.mxu0 0.0
  %185 = vmatprep.subr.mxu0 0.0
  %186 = vmatpush1.msra.mxu0 0.0
  %187 = vmatprep.subr.mxu0 0.0
  %188 = vmatpush1.msra.mxu0 0.0
  %189 = vmatprep.subr.mxu0 0.0
  %190 = vmatpush1.msra.mxu0 0.0
  %191 = vmatprep.subr.mxu0 0.0
  %192 = vmatpush1.msra.mxu0 0.0
  %193 = vmatprep.subr.mxu0 0.0
  %194 = vmatpush1.msra.mxu0 0.0
  %195 = vmatprep.subr.mxu0 0.0
  %196 = vmatpush1.msra.mxu0 0.0
  %197 = vmatprep.subr.mxu0 0.0
  %198 = vmatpush1.msra.mxu0 0.0
  %199 = vmatprep.subr.mxu0 0.0
  %200 = vmatpush1.msra.mxu0 0.0
  %201 = vmatprep.subr.mxu0 0.0
  %202 = vmatpush1.msra.mxu0 0.0
  %203 = vmatprep.subr.mxu0 0.0
  %204 = vmatpush1.msra.mxu0 0.0
  %205 = vmatprep.subr.mxu0 0.0
  %206 = vmatpush1.msra.mxu0 0.0
  %207 = vmatprep.subr.mxu0 0.0
  %208 = vmatpush1.msra.mxu0 0.0
  %209 = vmatprep.subr.mxu0 0.0
  %210 = vmatpush1.msra.mxu0 0.0
  %211 = vmatprep.subr.mxu0 0.0
  %212 = vmatpush1.msra.mxu0 0.0
  %213 = vmatprep.subr.mxu0 0.0
  %214 = vmatpush1.msra.mxu0 0.0
  %215 = vmatprep.subr.mxu0 0.0
  %216 = vmatpush1.msra.mxu0 0.0
  %217 = vmatprep.subr.mxu0 0.0
  %218 = vmatpush1.msra.mxu0 0.0
  %219 = vmatprep.subr.mxu0 0.0
  %220 = vmatpush1.msra.mxu0 0.0
  %221 = vmatprep.subr.mxu0 0.0
  %222 = vmatpush1.msra.mxu0 0.0
  %223 = vmatprep.subr.mxu0 0.0
  %224 = vmatpush1.msra.mxu0 0.0
  %225 = vmatprep.subr.mxu0 0.0
  %226 = vmatpush1.msra.mxu0 0.0
  %227 = vmatprep.subr.mxu0 0.0
  %228 = vmatpush1.msra.mxu0 0.0
  %229 = vmatprep.subr.mxu0 0.0
  %230 = vmatpush1.msra.mxu0 0.0
  %231 = vmatprep.subr.mxu0 0.0
  %232 = vmatpush1.msra.mxu0 0.0
  %233 = vmatprep.subr.mxu0 0.0
  %234 = vmatpush1.msra.mxu0 0.0
  %235 = vmatprep.subr.mxu0 0.0
  %236 = vmatpush1.msra.mxu0 0.0
  %237 = vmatprep.mubr.f32.mxu0 0.0
  %238 = vmatmul.mubr.f32.gmra.mrb[0].mxu0 %v157
  %v239 = vpop.f32.mrb[0].mxu0
  %v240 = vadd.f32 0.0, %v239
  %v241 = vpop.f32.mrb[0].mxu0
  %242 = vmatprep.mubr.f32.mxu0 0.0
  %243 = vmatmul.mubr.f32.gmra.mrb[0].mxu0 %v159
  %v244 = vpop.f32.mrb[0].mxu0
  %v245 = vadd.f32 0.0, %v244
  %v246 = vpop.f32.mrb[0].mxu0
  %247 = vmatprep.mubr.f32.mxu0 0.0
  %248 = vmatmul.mubr.f32.gmra.mrb[0].mxu0 %v161
  %v249 = vpop.f32.mrb[0].mxu0
  %v250 = vadd.f32 0.0, %v249
  %v251 = vpop.f32.mrb[0].mxu0
  %252 = vmatprep.mubr.f32.mxu0 0.0
  %253 = vmatmul.mubr.f32.gmra.mrb[0].mxu0 %v163
  %v254 = vpop.f32.mrb[0].mxu0
  %v255 = vadd.f32 0.0, %v254
  %v256 = vpop.f32.mrb[0].mxu0
  %257 = vmatprep.mubr.f32.mxu0 0.0
  %258 = vmatmul.mubr.f32.gmra.mrb[0].mxu0 %v165
  %v259 = vpop.f32.mrb[0].mxu0
  %v260 = vadd.f32 0.0, %v259
  %v261 = vpop.f32.mrb[0].mxu0
  %262 = vmatprep.mubr.f32.mxu0 0.0
  %263 = vmatmul.mubr.f32.gmra.mrb[0].mxu0 %v167
  %v264 = vpop.f32.mrb[0].mxu0
  %v265 = vadd.f32 0.0, %v264
  %v266 = vpop.f32.mrb[0].mxu0
  %267 = vmatprep.mubr.f32.mxu0 0.0
  %268 = vmatmul.mubr.f32.gmra.mrb[0].mxu0 %v169
  %v269 = vpop.f32.mrb[0].mxu0
  %v270 = vadd.f32 0.0, %v269
  %v271 = vpop.f32.mrb[0].mxu0
  %272 = vmatprep.mubr.f32.mxu0 0.0
  %273 = vmatmul.mubr.f32.gmra.mrb[0].mxu0 %v171
  %v274 = vpop.f32.mrb[0].mxu0
  %v275 = vadd.f32 0.0, %v274
  %v276 = vpop.f32.mrb[0].mxu0
  %277 = vdwg.mxu0
  %v279 = vcombine.high %v150, %v150
  %v281 = vunpack.c.l.s4 1966171168
  %v282 = vunpack.c.0.s8 %v281
  %v283 = vlaneseq
  %v284 = vshrl.u32 %v283, 7
  %v285 = vsub.s32 %v282, %v284
  %v286 = vrot.slane %v150, %v285
  %v288 = vunpack.c.l.s4 1966171168
  %v289 = vunpack.c.0.s8 %v288
  %v290 = vlaneseq
  %v291 = vshrl.u32 %v290, 7
  %v292 = vsub.s32 %v289, %v291
  %v293 = vrot.slane %v279, %v292
  %v294 = vcombine.high %v286, %v286
  %v295 = vcombine.high %v293, %v293
  %v297 = vunpack.c.l.s4 1966171168
  %v298 = vunpack.c.0.s8 %v297
  %v299 = vlaneseq
  %v300 = vshrl.u32 %v299, 7
  %v301 = vsub.s32 %v298, %v300
  %v302 = vrot.slane %v286, %v301
  %v304 = vunpack.c.l.s4 1966171168
  %v305 = vunpack.c.0.s8 %v304
  %v306 = vlaneseq
  %v307 = vshrl.u32 %v306, 7
  %v308 = vsub.s32 %v305, %v307
  %v309 = vrot.slane %v293, %v308
  %v311 = vunpack.c.l.s4 1966171168
  %v312 = vunpack.c.0.s8 %v311
  %v313 = vlaneseq
  %v314 = vshrl.u32 %v313, 7
  %v315 = vsub.s32 %v312, %v314
  %v316 = vrot.slane %v294, %v315
  %v318 = vunpack.c.l.s4 1966171168
  %v319 = vunpack.c.0.s8 %v318
  %v320 = vlaneseq
  %v321 = vshrl.u32 %v320, 7
  %v322 = vsub.s32 %v319, %v321
  %v323 = vrot.slane %v295, %v322
  %v324 = vcombine.high %v302, %v302
  %v325 = vcombine.high %v309, %v309
  %v326 = vcombine.high %v316, %v316
  %v327 = vcombine.high %v323, %v323
  %v328 = vlaneseq
  %v329 = vshrl.u32 %v328, 7
  %v330 = vsub.s32 0, %v329
  %v331 = vrot.slane %v302, %v330
  %v332 = vlaneseq
  %v333 = vshrl.u32 %v332, 7
  %v334 = vsub.s32 0, %v333
  %v335 = vrot.slane %v316, %v334
  %v336 = vlaneseq
  %v337 = vshrl.u32 %v336, 7
  %v338 = vsub.s32 0, %v337
  %v339 = vrot.slane %v324, %v338
  %v340 = vlaneseq
  %v341 = vshrl.u32 %v340, 7
  %v342 = vsub.s32 0, %v341
  %v343 = vrot.slane %v326, %v342
  %v344 = vlaneseq
  %v345 = vshrl.u32 %v344, 7
  %v346 = vsub.s32 0, %v345
  %v347 = vrot.slane %v309, %v346
  %v348 = vlaneseq
  %v349 = vshrl.u32 %v348, 7
  %v350 = vsub.s32 0, %v349
  %v351 = vrot.slane %v323, %v350
  %v352 = vlaneseq
  %v353 = vshrl.u32 %v352, 7
  %v354 = vsub.s32 0, %v353
  %v355 = vrot.slane %v325, %v354
  %v356 = vlaneseq
  %v357 = vshrl.u32 %v356, 7
  %v358 = vsub.s32 0, %v357
  %v359 = vrot.slane %v327, %v358
  %v368 = vadd.f32 %v240, %v331
  %v369 = vadd.f32 %v245, %v335
  %v370 = vadd.f32 %v250, %v339
  %v371 = vadd.f32 %v255, %v343
  %v372 = vadd.f32 %v260, %v347
  %v373 = vadd.f32 %v265, %v351
  %v374 = vadd.f32 %v270, %v355
  %v375 = vadd.f32 %v275, %v359
  %v376 = vtanh.pop %v368
  %v377 = vtanh.pop %v369
  %v378 = vtanh.pop %v370
  %v379 = vtanh.pop %v371
  %v380 = vtanh.pop %v372
  %v381 = vtanh.pop %v373
  %v382 = vtanh.pop %v374
  %v383 = vtanh.pop %v375
  %v384 = vld [vmem:[%s4] sm:$0x1]
  %v386 = vlaneseq
  %v387 = vshrl.u32 %v386, 7
  %v388 = vsub.s32 0, %v387
  %v389 = vrot.slane %v384, %v388
  %v391 = vmul.f32 %v376, %v389
  %v392 = vmul.f32 %v377, %v389
  %v393 = vmul.f32 %v378, %v389
  %v394 = vmul.f32 %v379, %v389
  %v395 = vmul.f32 %v380, %v389
  %v396 = vmul.f32 %v381, %v389
  %v397 = vmul.f32 %v382, %v389
  %v398 = vmul.f32 %v383, %v389
  %v399 = vsel %vm80, %v391, 0.0
  %400 = vadd.xlane.f32.xlu0 %v399
  %v401 = vpop.xlane.xlu0 %400
  %v402 = vsel %vm80, %v392, 0.0
  %403 = vadd.xlane.f32.xlu0 %v402
  %v404 = vpop.xlane.xlu0 %403
  %v405 = vsel %vm80, %v393, 0.0
  %406 = vadd.xlane.f32.xlu0 %v405
  %v407 = vpop.xlane.xlu0 %406
  %v408 = vsel %vm80, %v394, 0.0
  %409 = vadd.xlane.f32.xlu0 %v408
  %v410 = vpop.xlane.xlu0 %409
  %v411 = vsel %vm80, %v395, 0.0
  %412 = vadd.xlane.f32.xlu0 %v411
  %v413 = vpop.xlane.xlu0 %412
  %v414 = vsel %vm80, %v396, 0.0
  %415 = vadd.xlane.f32.xlu0 %v414
  %v416 = vpop.xlane.xlu0 %415
  %v417 = vsel %vm80, %v397, 0.0
  %418 = vadd.xlane.f32.xlu0 %v417
  %v419 = vpop.xlane.xlu0 %418
  %v420 = vsel %vm80, %v398, 0.0
  %421 = vadd.xlane.f32.xlu0 %v420
  %v422 = vpop.xlane.xlu0 %421
  %v423 = vrot.slane %v401, 4
  %v424 = vmax.f32 %v401, %v423
  %v425 = vrot.slane %v424, 2
  %v426 = vmax.f32 %v424, %v425
  %v427 = vrot.slane %v426, 1
  %v428 = vmax.f32 %v426, %v427
  %v429 = vrot.slane %v404, 4
  %v430 = vmax.f32 %v404, %v429
  %v431 = vrot.slane %v430, 2
  %v432 = vmax.f32 %v430, %v431
  %v433 = vrot.slane %v432, 1
  %v434 = vmax.f32 %v432, %v433
  %v435 = vrot.slane %v407, 4
  %v436 = vmax.f32 %v407, %v435
  %v437 = vrot.slane %v436, 2
  %v438 = vmax.f32 %v436, %v437
  %v439 = vrot.slane %v438, 1
  %v440 = vmax.f32 %v438, %v439
  %v441 = vrot.slane %v410, 4
  %v442 = vmax.f32 %v410, %v441
  %v443 = vrot.slane %v442, 2
  %v444 = vmax.f32 %v442, %v443
  %v445 = vrot.slane %v444, 1
  %v446 = vmax.f32 %v444, %v445
  %v447 = vrot.slane %v413, 4
  %v448 = vmax.f32 %v413, %v447
  %v449 = vrot.slane %v448, 2
  %v450 = vmax.f32 %v448, %v449
  %v451 = vrot.slane %v450, 1
  %v452 = vmax.f32 %v450, %v451
  %v453 = vrot.slane %v416, 4
  %v454 = vmax.f32 %v416, %v453
  %v455 = vrot.slane %v454, 2
  %v456 = vmax.f32 %v454, %v455
  %v457 = vrot.slane %v456, 1
  %v458 = vmax.f32 %v456, %v457
  %v459 = vrot.slane %v419, 4
  %v460 = vmax.f32 %v419, %v459
  %v461 = vrot.slane %v460, 2
  %v462 = vmax.f32 %v460, %v461
  %v463 = vrot.slane %v462, 1
  %v464 = vmax.f32 %v462, %v463
  %v465 = vrot.slane %v422, 4
  %v466 = vmax.f32 %v422, %v465
  %v467 = vrot.slane %v466, 2
  %v468 = vmax.f32 %v466, %v467
  %v469 = vrot.slane %v468, 1
  %v470 = vmax.f32 %v468, %v469
  %v471 = vsub.f32 %v401, %v428
  %v472 = vsub.f32 %v404, %v434
  %v473 = vsub.f32 %v407, %v440
  %v474 = vsub.f32 %v410, %v446
  %v475 = vsub.f32 %v413, %v452
  %v476 = vsub.f32 %v416, %v458
  %v477 = vsub.f32 %v419, %v464
  %v478 = vsub.f32 %v422, %v470
  %v479 = vmul.f32 %v471, 1.442695
  %v480 = vpow.pop %v479
  %v481 = vmul.f32 %v472, 1.442695
  %v482 = vpow.pop %v481
  %v483 = vmul.f32 %v473, 1.442695
  %v484 = vpow.pop %v483
  %v485 = vmul.f32 %v474, 1.442695
  %v486 = vpow.pop %v485
  %v487 = vmul.f32 %v475, 1.442695
  %v488 = vpow.pop %v487
  %v489 = vmul.f32 %v476, 1.442695
  %v490 = vpow.pop %v489
  %v491 = vmul.f32 %v477, 1.442695
  %v492 = vpow.pop %v491
  %v493 = vmul.f32 %v478, 1.442695
  %v494 = vpow.pop %v493
  %v495 = vrot.slane %v480, 4
  %v496 = vadd.f32 %v480, %v495
  %v497 = vrot.slane %v496, 2
  %v498 = vadd.f32 %v496, %v497
  %v499 = vrot.slane %v498, 1
  %v500 = vadd.f32 %v498, %v499
  %v501 = vrot.slane %v482, 4
  %v502 = vadd.f32 %v482, %v501
  %v503 = vrot.slane %v502, 2
  %v504 = vadd.f32 %v502, %v503
  %v505 = vrot.slane %v504, 1
  %v506 = vadd.f32 %v504, %v505
  %v507 = vrot.slane %v484, 4
  %v508 = vadd.f32 %v484, %v507
  %v509 = vrot.slane %v508, 2
  %v510 = vadd.f32 %v508, %v509
  %v511 = vrot.slane %v510, 1
  %v512 = vadd.f32 %v510, %v511
  %v513 = vrot.slane %v486, 4
  %v514 = vadd.f32 %v486, %v513
  %v515 = vrot.slane %v514, 2
  %v516 = vadd.f32 %v514, %v515
  %v517 = vrot.slane %v516, 1
  %v518 = vadd.f32 %v516, %v517
  %v519 = vrot.slane %v488, 4
  %v520 = vadd.f32 %v488, %v519
  %v521 = vrot.slane %v520, 2
  %v522 = vadd.f32 %v520, %v521
  %v523 = vrot.slane %v522, 1
  %v524 = vadd.f32 %v522, %v523
  %v525 = vrot.slane %v490, 4
  %v526 = vadd.f32 %v490, %v525
  %v527 = vrot.slane %v526, 2
  %v528 = vadd.f32 %v526, %v527
  %v529 = vrot.slane %v528, 1
  %v530 = vadd.f32 %v528, %v529
  %v531 = vrot.slane %v492, 4
  %v532 = vadd.f32 %v492, %v531
  %v533 = vrot.slane %v532, 2
  %v534 = vadd.f32 %v532, %v533
  %v535 = vrot.slane %v534, 1
  %v536 = vadd.f32 %v534, %v535
  %v537 = vrot.slane %v494, 4
  %v538 = vadd.f32 %v494, %v537
  %v539 = vrot.slane %v538, 2
  %v540 = vadd.f32 %v538, %v539
  %v541 = vrot.slane %v540, 1
  %v542 = vadd.f32 %v540, %v541
  %v543 = vrcp.pop %v500
  %v544 = vmul.f32 %v480, %v543
  %v545 = vrcp.pop %v506
  %v546 = vmul.f32 %v482, %v545
  %v547 = vrcp.pop %v512
  %v548 = vmul.f32 %v484, %v547
  %v549 = vrcp.pop %v518
  %v550 = vmul.f32 %v486, %v549
  %v551 = vrcp.pop %v524
  %v552 = vmul.f32 %v488, %v551
  %v553 = vrcp.pop %v530
  %v554 = vmul.f32 %v490, %v553
  %v555 = vrcp.pop %v536
  %v556 = vmul.f32 %v492, %v555
  %v557 = vrcp.pop %v542
  %v558 = vmul.f32 %v494, %v557
  %v559 = vmul.f32 %v544, %v32
  %v560 = vmul.f32 %v546, %v33
  %v561 = vmul.f32 %v548, %v34
  %v562 = vmul.f32 %v550, %v35
  %v563 = vmul.f32 %v552, %v36
  %v564 = vmul.f32 %v554, %v37
  %v565 = vmul.f32 %v556, %v38
  %v566 = vmul.f32 %v558, %v39
  %v567 = vsel %vm80, %v559, 0.0
  %v568 = vrot.slane %v567, 4
  %v569 = vadd.f32 %v567, %v568
  %v570 = vrot.slane %v569, 2
  %v571 = vadd.f32 %v569, %v570
  %v572 = vrot.slane %v571, 1
  %v573 = vadd.f32 %v571, %v572
  %v574 = vsel %vm80, %v560, 0.0
  %v575 = vrot.slane %v574, 4
  %v576 = vadd.f32 %v574, %v575
  %v577 = vrot.slane %v576, 2
  %v578 = vadd.f32 %v576, %v577
  %v579 = vrot.slane %v578, 1
  %v580 = vadd.f32 %v578, %v579
  %v581 = vsel %vm80, %v561, 0.0
  %v582 = vrot.slane %v581, 4
  %v583 = vadd.f32 %v581, %v582
  %v584 = vrot.slane %v583, 2
  %v585 = vadd.f32 %v583, %v584
  %v586 = vrot.slane %v585, 1
  %v587 = vadd.f32 %v585, %v586
  %v588 = vsel %vm80, %v562, 0.0
  %v589 = vrot.slane %v588, 4
  %v590 = vadd.f32 %v588, %v589
  %v591 = vrot.slane %v590, 2
  %v592 = vadd.f32 %v590, %v591
  %v593 = vrot.slane %v592, 1
  %v594 = vadd.f32 %v592, %v593
  %v595 = vsel %vm80, %v563, 0.0
  %v596 = vrot.slane %v595, 4
  %v597 = vadd.f32 %v595, %v596
  %v598 = vrot.slane %v597, 2
  %v599 = vadd.f32 %v597, %v598
  %v600 = vrot.slane %v599, 1
  %v601 = vadd.f32 %v599, %v600
  %v602 = vsel %vm80, %v564, 0.0
  %v603 = vrot.slane %v602, 4
  %v604 = vadd.f32 %v602, %v603
  %v605 = vrot.slane %v604, 2
  %v606 = vadd.f32 %v604, %v605
  %v607 = vrot.slane %v606, 1
  %v608 = vadd.f32 %v606, %v607
  %v609 = vsel %vm80, %v565, 0.0
  %v610 = vrot.slane %v609, 4
  %v611 = vadd.f32 %v609, %v610
  %v612 = vrot.slane %v611, 2
  %v613 = vadd.f32 %v611, %v612
  %v614 = vrot.slane %v613, 1
  %v615 = vadd.f32 %v613, %v614
  %v616 = vsel %vm80, %v566, 0.0
  %v617 = vrot.slane %v616, 4
  %v618 = vadd.f32 %v616, %v617
  %v619 = vrot.slane %v618, 2
  %v620 = vadd.f32 %v618, %v619
  %v621 = vrot.slane %v620, 1
  %v622 = vadd.f32 %v620, %v621
  %v623 = vld [vmem:[%s5] sm:$0xff]
  %v624 = vld [vmem:[%s5 + $0x8] sm:$0xff]
  %v625 = vld [vmem:[%s5 + $0x10] sm:$0xff]
  %v626 = vld [vmem:[%s5 + $0x18] sm:$0xff]
  %v627 = vld [vmem:[%s6] sm:$0x1]
  %v629 = vlaneseq
  %v630 = vshrl.u32 %v629, 7
  %v631 = vsub.s32 0, %v630
  %v632 = vrot.slane %v627, %v631
  %v642 = vsel %vm60, %v580, %v573
  %v643 = vsel %vm63, %v587, %v642
  %v644 = vsel %vm66, %v594, %v643
  %v645 = vsel %vm69, %v601, %v644
  %v646 = vsel %vm72, %v608, %v645
  %v647 = vsel %vm75, %v615, %v646
  %v648 = vsel %vm78, %v622, %v647
  %v649 = vsel %vm80, %v648, 0
  %651 = vmatprep.subr.mxu0 0.0
  %652 = vmatpush1.msra.mxu0 %v623
  %653 = vmatprep.subr.mxu0 0.0
  %654 = vmatpush1.msra.mxu0 %v624
  %655 = vmatprep.subr.mxu0 0.0
  %656 = vmatpush1.msra.mxu0 %v625
  %657 = vmatprep.subr.mxu0 0.0
  %658 = vmatpush1.msra.mxu0 %v626
  %659 = vmatprep.subr.mxu0 0.0
  %660 = vmatpush1.msra.mxu0 0.0
  %661 = vmatprep.subr.mxu0 0.0
  %662 = vmatpush1.msra.mxu0 0.0
  %663 = vmatprep.subr.mxu0 0.0
  %664 = vmatpush1.msra.mxu0 0.0
  %665 = vmatprep.subr.mxu0 0.0
  %666 = vmatpush1.msra.mxu0 0.0
  %667 = vmatprep.subr.mxu0 0.0
  %668 = vmatpush1.msra.mxu0 0.0
  %669 = vmatprep.subr.mxu0 0.0
  %670 = vmatpush1.msra.mxu0 0.0
  %671 = vmatprep.subr.mxu0 0.0
  %672 = vmatpush1.msra.mxu0 0.0
  %673 = vmatprep.subr.mxu0 0.0
  %674 = vmatpush1.msra.mxu0 0.0
  %675 = vmatprep.subr.mxu0 0.0
  %676 = vmatpush1.msra.mxu0 0.0
  %677 = vmatprep.subr.mxu0 0.0
  %678 = vmatpush1.msra.mxu0 0.0
  %679 = vmatprep.subr.mxu0 0.0
  %680 = vmatpush1.msra.mxu0 0.0
  %681 = vmatprep.subr.mxu0 0.0
  %682 = vmatpush1.msra.mxu0 0.0
  %683 = vmatprep.subr.mxu0 0.0
  %684 = vmatpush1.msra.mxu0 0.0
  %685 = vmatprep.subr.mxu0 0.0
  %686 = vmatpush1.msra.mxu0 0.0
  %687 = vmatprep.subr.mxu0 0.0
  %688 = vmatpush1.msra.mxu0 0.0
  %689 = vmatprep.subr.mxu0 0.0
  %690 = vmatpush1.msra.mxu0 0.0
  %691 = vmatprep.subr.mxu0 0.0
  %692 = vmatpush1.msra.mxu0 0.0
  %693 = vmatprep.subr.mxu0 0.0
  %694 = vmatpush1.msra.mxu0 0.0
  %695 = vmatprep.subr.mxu0 0.0
  %696 = vmatpush1.msra.mxu0 0.0
  %697 = vmatprep.subr.mxu0 0.0
  %698 = vmatpush1.msra.mxu0 0.0
  %699 = vmatprep.subr.mxu0 0.0
  %700 = vmatpush1.msra.mxu0 0.0
  %701 = vmatprep.subr.mxu0 0.0
  %702 = vmatpush1.msra.mxu0 0.0
  %703 = vmatprep.subr.mxu0 0.0
  %704 = vmatpush1.msra.mxu0 0.0
  %705 = vmatprep.subr.mxu0 0.0
  %706 = vmatpush1.msra.mxu0 0.0
  %707 = vmatprep.subr.mxu0 0.0
  %708 = vmatpush1.msra.mxu0 0.0
  %709 = vmatprep.subr.mxu0 0.0
  %710 = vmatpush1.msra.mxu0 0.0
  %711 = vmatprep.subr.mxu0 0.0
  %712 = vmatpush1.msra.mxu0 0.0
  %713 = vmatprep.subr.mxu0 0.0
  %714 = vmatpush1.msra.mxu0 0.0
  %715 = vmatprep.mubr.f32.mxu0 0.0
  %716 = vmatmul.mubr.f32.gmra.mrb[0].mxu0 %v649
  %v717 = vpop.f32.mrb[0].mxu0
  %v718 = vadd.f32 %v632, %v717
  %v719 = vpop.f32.mrb[0].mxu0
  %720 = vdwg.mxu0
  %v721 = vxor.u32 %v718, 2147483648
  %v722 = vmul.f32 %v721, 1.442695
  %v723 = vpow.pop %v722
  %v724 = vadd.f32 %v723, 1.0
  %v725 = vrcp.pop %v724
  %v726 = vmul.f32 1.0, %v725
  %v727 = vtanh.pop %v718
  %729 = vrot.lane.b32.xlu0 %v727, 96
  %v730 = vpop.permute.xlu0 %729
  %v732 = vmul.f32 %v726, %v730
  %v733 = vtanh.pop %v732
  %735 = vrot.lane.b32.xlu0 %v733, 64
  %v736 = vpop.permute.xlu0 %735
  %v738 = vmul.f32 %v726, %v736
  %v739 = vld [vmem:[%s7] sm:$0xff]
  %v740 = vld [vmem:[%s7 + $0x8] sm:$0xff]
  %v741 = vld [vmem:[%s7 + $0x10] sm:$0xff]
  %v742 = vld [vmem:[%s7 + $0x18] sm:$0xff]
  %v743 = vld [vmem:[%s8] sm:$0x1]
  %v745 = vlaneseq
  %v746 = vshrl.u32 %v745, 7
  %v747 = vsub.s32 0, %v746
  %v748 = vrot.slane %v743, %v747
  %751 = vrot.lane.b32.xlu0 %v738, 64
  %v752 = vpop.permute.xlu0 %751
  %v753 = vsel %vm80, %v752, 0
  %755 = vmatprep.subr.mxu0 0.0
  %756 = vmatpush1.msra.mxu0 %v739
  %757 = vmatprep.subr.mxu0 0.0
  %758 = vmatpush1.msra.mxu0 %v740
  %759 = vmatprep.subr.mxu0 0.0
  %760 = vmatpush1.msra.mxu0 %v741
  %761 = vmatprep.subr.mxu0 0.0
  %762 = vmatpush1.msra.mxu0 %v742
  %763 = vmatprep.subr.mxu0 0.0
  %764 = vmatpush1.msra.mxu0 0.0
  %765 = vmatprep.subr.mxu0 0.0
  %766 = vmatpush1.msra.mxu0 0.0
  %767 = vmatprep.subr.mxu0 0.0
  %768 = vmatpush1.msra.mxu0 0.0
  %769 = vmatprep.subr.mxu0 0.0
  %770 = vmatpush1.msra.mxu0 0.0
  %771 = vmatprep.subr.mxu0 0.0
  %772 = vmatpush1.msra.mxu0 0.0
  %773 = vmatprep.subr.mxu0 0.0
  %774 = vmatpush1.msra.mxu0 0.0
  %775 = vmatprep.subr.mxu0 0.0
  %776 = vmatpush1.msra.mxu0 0.0
  %777 = vmatprep.subr.mxu0 0.0
  %778 = vmatpush1.msra.mxu0 0.0
  %779 = vmatprep.subr.mxu0 0.0
  %780 = vmatpush1.msra.mxu0 0.0
  %781 = vmatprep.subr.mxu0 0.0
  %782 = vmatpush1.msra.mxu0 0.0
  %783 = vmatprep.subr.mxu0 0.0
  %784 = vmatpush1.msra.mxu0 0.0
  %785 = vmatprep.subr.mxu0 0.0
  %786 = vmatpush1.msra.mxu0 0.0
  %787 = vmatprep.subr.mxu0 0.0
  %788 = vmatpush1.msra.mxu0 0.0
  %789 = vmatprep.subr.mxu0 0.0
  %790 = vmatpush1.msra.mxu0 0.0
  %791 = vmatprep.subr.mxu0 0.0
  %792 = vmatpush1.msra.mxu0 0.0
  %793 = vmatprep.subr.mxu0 0.0
  %794 = vmatpush1.msra.mxu0 0.0
  %795 = vmatprep.subr.mxu0 0.0
  %796 = vmatpush1.msra.mxu0 0.0
  %797 = vmatprep.subr.mxu0 0.0
  %798 = vmatpush1.msra.mxu0 0.0
  %799 = vmatprep.subr.mxu0 0.0
  %800 = vmatpush1.msra.mxu0 0.0
  %801 = vmatprep.subr.mxu0 0.0
  %802 = vmatpush1.msra.mxu0 0.0
  %803 = vmatprep.subr.mxu0 0.0
  %804 = vmatpush1.msra.mxu0 0.0
  %805 = vmatprep.subr.mxu0 0.0
  %806 = vmatpush1.msra.mxu0 0.0
  %807 = vmatprep.subr.mxu0 0.0
  %808 = vmatpush1.msra.mxu0 0.0
  %809 = vmatprep.subr.mxu0 0.0
  %810 = vmatpush1.msra.mxu0 0.0
  %811 = vmatprep.subr.mxu0 0.0
  %812 = vmatpush1.msra.mxu0 0.0
  %813 = vmatprep.subr.mxu0 0.0
  %814 = vmatpush1.msra.mxu0 0.0
  %815 = vmatprep.subr.mxu0 0.0
  %816 = vmatpush1.msra.mxu0 0.0
  %817 = vmatprep.subr.mxu0 0.0
  %818 = vmatpush1.msra.mxu0 0.0
  %819 = vmatprep.mubr.f32.mxu0 0.0
  %820 = vmatmul.mubr.f32.gmra.mrb[0].mxu0 %v753
  %v821 = vpop.f32.mrb[0].mxu0
  %v822 = vadd.f32 %v748, %v821
  %v823 = vpop.f32.mrb[0].mxu0
  %824 = vdwg.mxu0
  %825 = vst [vmem:[%s9] sm:$0xff] %v822
  // Predicated region
  $region38: #{_scoring_forward.1} parent=0 // pred_check
    _
  $region39: #{_scoring_forward.1} parent=0 // pred_check_branch
    %827 = sbr.rel (0) target = $region41
  $region40: #{_scoring_forward.1} parent=0 // pred_region
    _
  $region41: #{_scoring_forward.1} parent=0 // pred_fallthru
    _
  // Predicated region
  $region42: #{_scoring_forward.1} parent=0 // pred_check
    _
  $region43: #{_scoring_forward.1} parent=0 // pred_check_branch
    %829 = sbr.rel (0) target = $region45
  $region44: #{_scoring_forward.1} parent=0 // pred_region
    _
  $region45: #{_scoring_forward.1} parent=0 // pred_fallthru
    _

</llo_original>
